<compile_context>
chip_gen: v7x
topology: tpu7x:2x2x1
jax: 0.10.0
libtpu: 0.0.40
codegen_flags: <defaults>
</compile_context>

<pallas_src>
import jax
import jax.numpy as jnp
from jax.experimental import pallas as pl
from jax.experimental.pallas import tpu as pltpu

# ---- hyperparameters from the PyTorch spec ----
N_EMBD = 384          # n_embd
BLOCK_SIZE = 256      # block_size (max context; tril buffer extent)
HEAD_SIZE = 64        # head_size passed to Head (n_embd // n_head for n_head=6)
HS_PAD = 128          # head dim padded to one full lane width
NEG_INF = -1e30       # finite additive mask value (avoids -inf -> NaN)
# dropout = 0.2 at train time; identity at inference (what this kernel computes)


def head_kernel(x_ref, wqkv_ref, mask_ref, out_ref):
    """One head of causal self-attention for one batch element.

    x_ref    : (1, T, C)       f32 activations
    wqkv_ref : (C, 3*HS_PAD)   bf16 fused [Wq | Wk | Wv], zero-padded to 128 lanes each
    mask_ref : (T, T)          f32 additive causal bias (0 or NEG_INF)
    out_ref  : (1, T, HS_PAD)  f32 output (real data in [..., :HEAD_SIZE])
    """
    x = x_ref[0].astype(jnp.bfloat16)                       # (T, C) bf16 MXU operand

    # Fused QKV: one full-width MXU matmul instead of three narrow ones.
    qkv = jnp.dot(x, wqkv_ref[...],
                  preferred_element_type=jnp.float32)       # (T, 3*HS_PAD) f32

    scale = HEAD_SIZE ** -0.5                               # scale uses the REAL head size
    q = (qkv[:, 0 * HS_PAD:1 * HS_PAD] * scale).astype(jnp.bfloat16)   # lane-aligned slices
    k = qkv[:, 1 * HS_PAD:2 * HS_PAD].astype(jnp.bfloat16)
    v = qkv[:, 2 * HS_PAD:3 * HS_PAD].astype(jnp.bfloat16)

    # wei = softmax( mask(q @ k^T) ); softmax statistics kept in f32.
    wei = jnp.dot(q, k.T, preferred_element_type=jnp.float32)          # (T, T) f32
    wei = wei + mask_ref[...]                                           # additive causal bias
    wei = wei - jnp.max(wei, axis=-1, keepdims=True)
    p = jnp.exp(wei)
    inv = pl.reciprocal(jnp.sum(p, axis=-1, keepdims=True), approx=True)  # EUP, ~free
    p = (p * inv).astype(jnp.bfloat16)
    # TODO(synk): attention dropout (p=0.2) is identity at inference; not implemented.

    out = jnp.dot(p, v, preferred_element_type=jnp.float32)            # (T, HS_PAD)
    out_ref[0] = out.astype(out_ref.dtype)                              # lane-dense store


def head_forward(x, wq, wk, wv):
    """x: (B, T, C) f32; wq/wk/wv: (C, HEAD_SIZE) f32 -> (B, T, HEAD_SIZE) f32."""
    B, T, C = x.shape
    assert C == N_EMBD and T <= BLOCK_SIZE

    # One-time weight prep: zero-pad each projection to 128 lanes, fuse, cast to bf16.
    def pad(w):
        return jnp.pad(w, ((0, 0), (0, HS_PAD - HEAD_SIZE)))
    wqkv = jnp.concatenate([pad(wq), pad(wk), pad(wv)], axis=1).astype(jnp.bfloat16)

    # Additive causal bias, built once on the host (equivalent of the tril buffer).
    row = jax.lax.broadcasted_iota(jnp.int32, (T, T), 0)
    col = jax.lax.broadcasted_iota(jnp.int32, (T, T), 1)
    mask = jnp.where(row >= col, 0.0, NEG_INF).astype(jnp.float32)

    out_padded = pl.pallas_call(
        head_kernel,
        out_shape=jax.ShapeDtypeStruct((B, T, HS_PAD), jnp.float32),
        grid=(B,),
        in_specs=[
            pl.BlockSpec((1, T, C), lambda b: (b, 0, 0)),
            pl.BlockSpec((C, 3 * HS_PAD), lambda b: (0, 0)),   # resident weights
            pl.BlockSpec((T, T), lambda b: (0, 0)),            # resident mask
        ],
        out_specs=pl.BlockSpec((1, T, HS_PAD), lambda b: (b, 0, 0)),
        compiler_params=pltpu.CompilerParams(
            dimension_semantics=("parallel",)),                # batch axis -> both v7x TCs
    )(x, wqkv, mask)

    return out_padded[:, :, :HEAD_SIZE]                       # drop the lane padding (glue)


def _head_reference(x, wq, wk, wv):
    """Pure-JAX f32 reference matching the PyTorch forward (eval mode)."""
    T = x.shape[1]
    q = x @ wq
    k = x @ wk
    v = x @ wv
    wei = jnp.einsum("btd,bsd->bts", q, k) * (HEAD_SIZE ** -0.5)
    causal = jnp.tril(jnp.ones((T, T), dtype=bool))
    wei = jnp.where(causal[None], wei, -jnp.inf)
    p = jax.nn.softmax(wei, axis=-1)
    return jnp.einsum("bts,bsd->btd", p, v)


if __name__ == "__main__":
    key = jax.random.PRNGKey(0)
    kx, kq, kk, kv = jax.random.split(key, 4)

    B, T = 2, 128                                  # T <= block_size (256)
    x = 0.02 * jax.random.normal(kx, (B, T, N_EMBD), dtype=jnp.float32)
    wq = 0.02 * jax.random.normal(kq, (N_EMBD, HEAD_SIZE), dtype=jnp.float32)
    wk = 0.02 * jax.random.normal(kk, (N_EMBD, HEAD_SIZE), dtype=jnp.float32)
    wv = 0.02 * jax.random.normal(kv, (N_EMBD, HEAD_SIZE), dtype=jnp.float32)

    out = head_forward(x, wq, wk, wv)
    out = jax.block_until_ready(out)

    assert out.shape == (B, T, HEAD_SIZE), out.shape
    assert bool(jnp.all(jnp.isfinite(out)))

    ref = _head_reference(x, wq, wk, wv)
    assert bool(jnp.allclose(out, ref, rtol=1e-1, atol=1e-4)), \
        float(jnp.max(jnp.abs(out - ref)))

    print("KERNEL_OK")
</pallas_src>

<mosaic_0001>
module attributes {stable_mosaic.version = 11 : i64} {
  func.func @head_kernel(%arg0: i32, %arg1: memref<1x128x384xf32, #tpu.memory_space<vmem>>, %arg2: memref<384x384xbf16, #tpu.memory_space<vmem>>, %arg3: memref<128x128xf32, #tpu.memory_space<vmem>>, %arg4: memref<1x128x128xf32, #tpu.memory_space<vmem>>) attributes {dimension_semantics = [#tpu.dimension_semantics<parallel>], iteration_bounds = array<i64: 2>, scalar_prefetch = 0 : i64, scratch_operands = 0 : i64, tpu.core_type = #tpu.core_type<tc>, window_params = [{transform_indices = @transform_0, window_bounds = array<i64: 1, 128, 384>}, {pipeline_mode = #tpu.pipeline_mode<synchronous>, transform_indices = @transform_1, window_bounds = array<i64: 384, 384>}, {pipeline_mode = #tpu.pipeline_mode<synchronous>, transform_indices = @transform_2, window_bounds = array<i64: 128, 128>}, {transform_indices = @transform_3, window_bounds = array<i64: 1, 128, 128>}]} {
    %c0 = arith.constant 0 : index
    %c0_0 = arith.constant 0 : index
    %c0_1 = arith.constant 0 : index
    %0 = vector.load %arg1[%c0, %c0_0, %c0_1] : memref<1x128x384xf32, #tpu.memory_space<vmem>>, vector<1x128x384xf32>
    %1 = vector.shape_cast %0 : vector<1x128x384xf32> to vector<128x384xf32>
    %2 = arith.truncf %1 : vector<128x384xf32> to vector<128x384xbf16>
    %c0_2 = arith.constant 0 : index
    %c0_3 = arith.constant 0 : index
    %3 = vector.load %arg2[%c0_2, %c0_3] : memref<384x384xbf16, #tpu.memory_space<vmem>>, vector<384x384xbf16>
    %cst = arith.constant dense<0.000000e+00> : vector<128x384xf32>
    %4 = tpu.matmul %2, %3, %cst {dimension_numbers = #tpu.dot_dimension_numbers<[1], [0], [0], [1], [0, 0, 1, 1], [], []>} : vector<128x384xbf16>, vector<384x384xbf16>, vector<128x384xf32> -> vector<128x384xf32>
    %5 = vector.extract_strided_slice %4 {offsets = [0, 0], sizes = [128, 128], strides = [1, 1]} : vector<128x384xf32> to vector<128x128xf32>
    %cst_4 = arith.constant 1.250000e-01 : f32
    %6 = vector.broadcast %cst_4 : f32 to vector<128x128xf32>
    %7 = arith.mulf %5, %6 : vector<128x128xf32>
    %8 = arith.truncf %7 : vector<128x128xf32> to vector<128x128xbf16>
    %9 = vector.extract_strided_slice %4 {offsets = [0, 128], sizes = [128, 128], strides = [1, 1]} : vector<128x384xf32> to vector<128x128xf32>
    %10 = arith.truncf %9 : vector<128x128xf32> to vector<128x128xbf16>
    %11 = vector.extract_strided_slice %4 {offsets = [0, 256], sizes = [128, 128], strides = [1, 1]} : vector<128x384xf32> to vector<128x128xf32>
    %12 = arith.truncf %11 : vector<128x128xf32> to vector<128x128xbf16>
    %13 = tpu.transpose %10, [1, 0] : vector<128x128xbf16> -> vector<128x128xbf16>
    %cst_5 = arith.constant dense<0.000000e+00> : vector<128x128xf32>
    %14 = tpu.matmul %8, %13, %cst_5 {dimension_numbers = #tpu.dot_dimension_numbers<[1], [0], [0], [1], [0, 0, 1, 1], [], []>} : vector<128x128xbf16>, vector<128x128xbf16>, vector<128x128xf32> -> vector<128x128xf32>
    %c0_6 = arith.constant 0 : index
    %c0_7 = arith.constant 0 : index
    %15 = vector.load %arg3[%c0_6, %c0_7] : memref<128x128xf32, #tpu.memory_space<vmem>>, vector<128x128xf32>
    %16 = arith.addf %14, %15 : vector<128x128xf32>
    %cst_8 = arith.constant dense<0xFF800000> : vector<128xf32>
    %17 = vector.multi_reduction <maximumf>, %16, %cst_8 [1] : vector<128x128xf32> to vector<128xf32>
    %18 = vector.shape_cast %17 : vector<128xf32> to vector<128x1xf32>
    %19 = vector.broadcast %18 : vector<128x1xf32> to vector<128x128xf32>
    %20 = arith.subf %16, %19 : vector<128x128xf32>
    %21 = math.exp %20 : vector<128x128xf32>
    %cst_9 = arith.constant dense<0.000000e+00> : vector<128xf32>
    %22 = vector.multi_reduction <add>, %21, %cst_9 [1] : vector<128x128xf32> to vector<128xf32>
    %23 = vector.shape_cast %22 : vector<128xf32> to vector<128x1xf32>
    %24 = tpu.reciprocal %23 {approx = true} : vector<128x1xf32> -> vector<128x1xf32>
    %25 = vector.broadcast %24 : vector<128x1xf32> to vector<128x128xf32>
    %26 = arith.mulf %21, %25 : vector<128x128xf32>
    %27 = arith.truncf %26 : vector<128x128xf32> to vector<128x128xbf16>
    %cst_10 = arith.constant dense<0.000000e+00> : vector<128x128xf32>
    %28 = tpu.matmul %27, %12, %cst_10 {dimension_numbers = #tpu.dot_dimension_numbers<[1], [0], [0], [1], [0, 0, 1, 1], [], []>} : vector<128x128xbf16>, vector<128x128xbf16>, vector<128x128xf32> -> vector<128x128xf32>
    %c0_11 = arith.constant 0 : index
    %c0_12 = arith.constant 0 : index
    %c0_13 = arith.constant 0 : index
    %29 = vector.load %arg4[%c0_11, %c0_12, %c0_13] : memref<1x128x128xf32, #tpu.memory_space<vmem>>, vector<1x128x128xf32>
    %30 = vector.shape_cast %29 : vector<1x128x128xf32> to vector<128x128xf32>
    %31 = vector.shape_cast %28 : vector<128x128xf32> to vector<1x128x128xf32>
    tpu.vector_store %arg4[%c0_11, %c0_12, %c0_13], %31 {strides = array<i32>} : memref<1x128x128xf32, #tpu.memory_space<vmem>>, vector<1x128x128xf32>,
    return
  }
  func.func @transform_0(%arg0: i32) -> (i32, i32, i32) {
    %c0_i32 = arith.constant 0 : i32
    %c0_i32_0 = arith.constant 0 : i32
    %c0_i32_1 = arith.constant 0 : i32
    return %arg0, %c0_i32, %c0_i32_0 : i32, i32, i32
  }
  func.func @transform_1(%arg0: i32) -> (i32, i32) {
    %c0_i32 = arith.constant 0 : i32
    %c0_i32_0 = arith.constant 0 : i32
    %c0_i32_1 = arith.constant 0 : i32
    return %c0_i32, %c0_i32_0 : i32, i32
  }
  func.func @transform_2(%arg0: i32) -> (i32, i32) {
    %c0_i32 = arith.constant 0 : i32
    %c0_i32_0 = arith.constant 0 : i32
    %c0_i32_1 = arith.constant 0 : i32
    return %c0_i32, %c0_i32_0 : i32, i32
  }
  func.func @transform_3(%arg0: i32) -> (i32, i32, i32) {
    %c0_i32 = arith.constant 0 : i32
    %c0_i32_0 = arith.constant 0 : i32
    %c0_i32_1 = arith.constant 0 : i32
    return %arg0, %c0_i32, %c0_i32_0 : i32, i32, i32
  }
}

</mosaic_0001>

<llo_original>
// kernel: tpu_custom_call.1
$region0: #{tpu_custom_call.1}
  #allocation0 [shape = 'u32[]', space=smem, size = 0x4, offset = 0x4, fixed_abs, tag = 'smem constant byte address 0x4 - core index']
  #allocation1 [shape = 'u32[144,128]{1,0:T(1,128)}', space=vmem, size = 0x12000, scoped, tag = 'internal scratch']
  %s0 = inlined_call_operand.hbm [shape: f32[2,128,384], index: 0, kind: input, shape index: {}]
  %s1 = inlined_call_operand.hbm [shape: bf16[384,384], index: 1, kind: input, shape index: {}]
  %s2 = inlined_call_operand.hbm [shape: f32[128,128], index: 2, kind: input, shape index: {}]
  %s3 = inlined_call_operand.hbm [shape: f32[2,128,128], index: 3, kind: output, shape index: {}]
  %s4 = sld [smem:[#allocation0]]
  $region57: #{tpu_custom_call.1} parent=0
    _
  %s6 = ssub.s32 1, %s4
  %s7 = scalar_select 0, %s6, %s4
  $region1: #{tpu_custom_call.1} parent=0
    #allocation2 [shape = 'u8[393216]{0}', space=vmem, size = 0x60000, scoped, tag = 'input window, operand 0']
    #allocation3 [shape = 's32[2]{0}', space=sflag, size = 0x8, scoped, tag = 'scoped memory for tpu_custom_call.1']
    #allocation4 [shape = 's32[2]{0}', space=sflag, size = 0x8, scoped, tag = 'scoped memory for tpu_custom_call.1']
    #allocation5 [shape = 'u8[294912]{0}', space=vmem, size = 0x48000, scoped, tag = 'input window, operand 1, single buffered']
    #allocation6 [shape = 's32[1]{0}', space=sflag, size = 0x4, scoped, tag = 'scoped memory for tpu_custom_call.1']
    #allocation7 [shape = 'u8[65536]{0}', space=vmem, size = 0x10000, scoped, tag = 'input window, operand 2, single buffered']
    #allocation8 [shape = 'u8[131072]{0}', space=vmem, size = 0x20000, scoped, tag = 'output window, operand 0']
    %8 = vsyncpa [#allocation3], 0
    %s9 = scalar_lea.sflag [#allocation3], 1
    %10 = vsyncpa %s9, 0
    %11 = vsyncpa [#allocation6], 0
    %12 = vsyncpa [#allocation4], 0
    %s13 = scalar_lea.sflag [#allocation4], 1
    %14 = vsyncpa %s13, 0
    loop: start=0, step=1, limit=4
    $region2: #{tpu_custom_call.1} parent=1 // loop_pre_header
      _
    $region3: #{tpu_custom_call.1} parent=1 // loop_header
      %s16 = sphi 0, %s20
      %p17 = scmp.ge.s32.totalorder %s16, 4
      %s26 = sphi 0, %s28
      %s29 = sphi 0, %s26
      %s30 = sphi 0, %s29
      %s46 = sphi 0, %s30
      %s50 = sphi 0, %s50
      %s52 = sphi 0, %s50
      %s53 = sphi 0, %s52
      %s67 = sphi 0, %s53
      %s71 = sphi 0, %s71
      %s73 = sphi 0, %s71
      %s74 = sphi 0, %s73
      %s88 = sphi 0, %s74
      %s94 = sphi 0, %s96
      %s97 = sphi 0, %s94
      %s98 = sphi 0, %s97
      %s114 = sphi 0, %s98
    $region4: #{tpu_custom_call.1} parent=1 // loop_header_branch
      %19 = sbr.rel (%p17) target = $region8
    $region5: #{tpu_custom_call.1} parent=1 // loop_body
      %s21 = ssub.s32 %s16, 1
      %s22 = ssub.s32 %s16, 2
      %s23 = sadd.s32 %s16, 1
      %s24 = ssub.s32 %s16, %s23
      %p25 = scmp.eq.s32.totalorder %s24, 0
      %s27 = sadd.s32 %s26, 1
      %s28 = scalar_select %p25, %s26, %s27
      %p31 = pneg %p25
      %p32 = scmp.eq.s32.totalorder %s16, 1
      %p33 = por %p31, %p32
      %p34 = scmp.ne.s32.totalorder %s26, %s29
      %p35 = scmp.eq.s32.totalorder %s16, 0
      %p36 = por %p34, %p35
      %p37 = scmp.ne.s32.totalorder %s26, %s29
      %p38 = scmp.eq.s32.totalorder %s21, 1
      %p39 = por %p37, %p38
      %p40 = scmp.ne.s32.totalorder %s29, %s30
      %p41 = scmp.eq.s32.totalorder %s21, 0
      %p42 = por %p40, %p41
      %p43 = scmp.ne.s32.totalorder %s29, %s30
      %p44 = scmp.eq.s32.totalorder %s22, 1
      %p45 = por %p43, %p44
      %p47 = scmp.ne.s32.totalorder %s30, %s46
      %p48 = scmp.eq.s32.totalorder %s22, 0
      %p49 = por %p47, %p48
      %s51 = sadd.s32 %s50, 1
      %p54 = scmp.eq.s32.totalorder %s16, 1
      %p55 = scmp.ne.s32.totalorder %s50, %s52
      %p56 = scmp.eq.s32.totalorder %s16, 0
      %p57 = por %p55, %p56
      %p58 = scmp.ne.s32.totalorder %s50, %s52
      %p59 = scmp.eq.s32.totalorder %s21, 1
      %p60 = por %p58, %p59
      %p61 = scmp.ne.s32.totalorder %s52, %s53
      %p62 = scmp.eq.s32.totalorder %s21, 0
      %p63 = por %p61, %p62
      %p64 = scmp.ne.s32.totalorder %s52, %s53
      %p65 = scmp.eq.s32.totalorder %s22, 1
      %p66 = por %p64, %p65
      %p68 = scmp.ne.s32.totalorder %s53, %s67
      %p69 = scmp.eq.s32.totalorder %s22, 0
      %p70 = por %p68, %p69
      %s72 = sadd.s32 %s71, 1
      %p75 = scmp.eq.s32.totalorder %s16, 1
      %p76 = scmp.ne.s32.totalorder %s71, %s73
      %p77 = scmp.eq.s32.totalorder %s16, 0
      %p78 = por %p76, %p77
      %p79 = scmp.ne.s32.totalorder %s71, %s73
      %p80 = scmp.eq.s32.totalorder %s21, 1
      %p81 = por %p79, %p80
      %p82 = scmp.ne.s32.totalorder %s73, %s74
      %p83 = scmp.eq.s32.totalorder %s21, 0
      %p84 = por %p82, %p83
      %p85 = scmp.ne.s32.totalorder %s73, %s74
      %p86 = scmp.eq.s32.totalorder %s22, 1
      %p87 = por %p85, %p86
      %p89 = scmp.ne.s32.totalorder %s74, %s88
      %p90 = scmp.eq.s32.totalorder %s22, 0
      %p91 = por %p89, %p90
      %s92 = ssub.s32 %s16, %s23
      %p93 = scmp.eq.s32.totalorder %s92, 0
      %s95 = sadd.s32 %s94, 1
      %s96 = scalar_select %p93, %s94, %s95
      %p99 = pneg %p93
      %p100 = scmp.eq.s32.totalorder %s16, 1
      %p101 = por %p99, %p100
      %p102 = scmp.ne.s32.totalorder %s94, %s97
      %p103 = scmp.eq.s32.totalorder %s16, 0
      %p104 = por %p102, %p103
      %p105 = scmp.ne.s32.totalorder %s94, %s97
      %p106 = scmp.eq.s32.totalorder %s21, 1
      %p107 = por %p105, %p106
      %p108 = scmp.ne.s32.totalorder %s97, %s98
      %p109 = scmp.eq.s32.totalorder %s21, 0
      %p110 = por %p108, %p109
      %p111 = scmp.ne.s32.totalorder %s97, %s98
      %p112 = scmp.eq.s32.totalorder %s22, 1
      %p113 = por %p111, %p112
      %p115 = scmp.ne.s32.totalorder %s98, %s114
      %p116 = scmp.eq.s32.totalorder %s22, 0
      %p117 = por %p115, %p116
      %p118 = scmp.le.s32.totalorder 1, %s16
      %p119 = scmp.lt.s32.totalorder %s16, 3
      %p120 = pnand %p118, %p119
      %p121 = pneg %p120
      // Predicated region
      $region9: #{tpu_custom_call.1} parent=5 // pred_check
        _
      $region10: #{tpu_custom_call.1} parent=5 // pred_check_branch
        %123 = sbr.rel (%p120) target = $region12
      $region11: #{tpu_custom_call.1} parent=5 // pred_region
        %s124 = ssub.s32 %s16, 1
        // Predicated region
        $region13: #{tpu_custom_call.1} parent=11 // pred_check
          %p125 = pneg %p63
        $region14: #{tpu_custom_call.1} parent=11 // pred_check_branch
          %127 = sbr.rel (%p125) target = $region16
        $region15: #{tpu_custom_call.1} parent=11 // pred_region
          %s129 = ssub.s32 9216, 9216
          %130 = vsyncadd [#allocation6], %s129
          %s131 = sshll.u32 [#allocation5], 4
          %s132 = int_to_ptr.vmem [resolvable:$true] %s131
          %137 = dma.hbm_to_vmem [thread:$0]  %s1, 9216, %s132, [#allocation6], 192, 192, 12
        $region16: #{tpu_custom_call.1} parent=11 // pred_fallthru
          _
        // Predicated region
        $region17: #{tpu_custom_call.1} parent=11 // pred_check
          %p138 = pneg %p84
        $region18: #{tpu_custom_call.1} parent=11 // pred_check_branch
          %140 = sbr.rel (%p138) target = $region20
        $region19: #{tpu_custom_call.1} parent=11 // pred_region
          %s142 = ssub.s32 2048, 2048
          %143 = vsyncadd [#allocation6], %s142
          %s144 = sshll.u32 [#allocation7], 4
          %s145 = int_to_ptr.vmem [resolvable:$true] %s144
          %150 = dma.hbm_to_vmem [thread:$0]  %s2, 2048, %s145, [#allocation6], 128, 128, 8
        $region20: #{tpu_custom_call.1} parent=11 // pred_fallthru
          _
      $region12: #{tpu_custom_call.1} parent=5 // pred_fallthru
        _
      %p151 = scmp.lt.s32.totalorder %s16, 2
      // Predicated region
      $region21: #{tpu_custom_call.1} parent=5 // pred_check
        %p152 = pneg %p151
      $region22: #{tpu_custom_call.1} parent=5 // pred_check_branch
        %154 = sbr.rel (%p152) target = $region24
      $region23: #{tpu_custom_call.1} parent=5 // pred_region
        // Predicated region
        $region25: #{tpu_custom_call.1} parent=23 // pred_check
          %p155 = pneg %p36
        $region26: #{tpu_custom_call.1} parent=23 // pred_check_branch
          %157 = sbr.rel (%p155) target = $region28
        $region27: #{tpu_custom_call.1} parent=23 // pred_region
          %s158 = sand.u32 %s26, 1
          %s159 = scalar_lea.sflag [#allocation3], %s158
          %s160 = sand.u32 %s26, 1
          %s161 = smul.addr %s160, 384
          %s162 = scalar_lea.vmem [#allocation2], %s161
          %s164 = ssub.s32 6144, 6144
          %165 = vsyncadd %s159, %s164
          %s166 = smul.addr %s16, 48
          %s167 = smul.addr %s166, 128
          %s168 = scalar_lea.hbm %s0, %s167
          %s169 = sshll.u32 %s162, 4
          %s170 = int_to_ptr.vmem [resolvable:$true] %s169
          %175 = dma.hbm_to_vmem [thread:$0]  %s168, 6144, %s170, %s159, 384, 384, 24
        $region28: #{tpu_custom_call.1} parent=23 // pred_fallthru
          _
      $region24: #{tpu_custom_call.1} parent=5 // pred_fallthru
        _
      %p176 = scmp.le.s32.totalorder 1, %s16
      %p177 = scmp.lt.s32.totalorder %s16, 3
      %p178 = pnand %p176, %p177
      %p179 = pneg %p178
      // Predicated region
      $region29: #{tpu_custom_call.1} parent=5 // pred_check
        _
      $region30: #{tpu_custom_call.1} parent=5 // pred_check_branch
        %181 = sbr.rel (%p178) target = $region32
      $region31: #{tpu_custom_call.1} parent=5 // pred_region
        %s182 = ssub.s32 %s16, 1
        %s183 = sand.u32 %s29, 1
        %s184 = scalar_lea.sflag [#allocation3], %s183
        %s185 = sand.u32 %s29, 1
        %s186 = smul.addr %s185, 384
        %s187 = scalar_lea.vmem [#allocation2], %s186
        // Predicated region
        $region33: #{tpu_custom_call.1} parent=31 // pred_check
          %p188 = pneg %p42
        $region34: #{tpu_custom_call.1} parent=31 // pred_check_branch
          %190 = sbr.rel (%p188) target = $region36
        $region35: #{tpu_custom_call.1} parent=31 // pred_region
          %191 = dma.done %s184, 6144
        $region36: #{tpu_custom_call.1} parent=31 // pred_fallthru
          _
        // Predicated region
        $region37: #{tpu_custom_call.1} parent=31 // pred_check
          %p192 = pneg %p63
        $region38: #{tpu_custom_call.1} parent=31 // pred_check_branch
          %194 = sbr.rel (%p192) target = $region40
        $region39: #{tpu_custom_call.1} parent=31 // pred_region
          %195 = dma.done [#allocation6], 9216
        $region40: #{tpu_custom_call.1} parent=31 // pred_fallthru
          _
        // Predicated region
        $region41: #{tpu_custom_call.1} parent=31 // pred_check
          %p196 = pneg %p84
        $region42: #{tpu_custom_call.1} parent=31 // pred_check_branch
          %198 = sbr.rel (%p196) target = $region44
        $region43: #{tpu_custom_call.1} parent=31 // pred_region
          %199 = dma.done [#allocation6], 2048
        $region44: #{tpu_custom_call.1} parent=31 // pred_fallthru
          _
        %s200 = sand.u32 %s29, 1
        %s201 = scalar_lea.sflag [#allocation3], %s200
        %s202 = sand.u32 %s29, 1
        %s203 = smul.addr %s202, 384
        %s204 = scalar_lea.vmem [#allocation2], %s203
        %p205 = pneg %p42
        %p206 = pneg %p39
        %p207 = pneg %p63
        %p208 = pneg %p60
        %p209 = pneg %p84
        %p210 = pneg %p81
        %p211 = pneg %p110
        %p212 = pneg %p107
        %s213 = sand.u32 %s97, 1
        %s214 = scalar_lea.sflag [#allocation4], %s213
        %s215 = sand.u32 %s97, 1
        %s216 = smul.addr %s215, 128
        %s217 = scalar_lea.vmem [#allocation8], %s216
        %v219 = vld [vmem:[%s187] sm:$0xff]
        %v220 = vld [vmem:[%s187 + $0x8] sm:$0xff]
        %v221 = vld [vmem:[%s187 + $0x10] sm:$0xff]
        %v222 = vld [vmem:[%s187 + $0x18] sm:$0xff]
        %v223 = vld [vmem:[%s187 + $0x20] sm:$0xff]
        %v224 = vld [vmem:[%s187 + $0x28] sm:$0xff]
        %v225 = vld [vmem:[%s187 + $0x30] sm:$0xff]
        %v226 = vld [vmem:[%s187 + $0x38] sm:$0xff]
        %v227 = vld [vmem:[%s187 + $0x40] sm:$0xff]
        %v228 = vld [vmem:[%s187 + $0x48] sm:$0xff]
        %v229 = vld [vmem:[%s187 + $0x50] sm:$0xff]
        %v230 = vld [vmem:[%s187 + $0x58] sm:$0xff]
        %v231 = vld [vmem:[%s187 + $0x60] sm:$0xff]
        %v232 = vld [vmem:[%s187 + $0x68] sm:$0xff]
        %v233 = vld [vmem:[%s187 + $0x70] sm:$0xff]
        %v234 = vld [vmem:[%s187 + $0x78] sm:$0xff]
        %v235 = vld [vmem:[%s187 + $0x80] sm:$0xff]
        %v236 = vld [vmem:[%s187 + $0x88] sm:$0xff]
        %v237 = vld [vmem:[%s187 + $0x90] sm:$0xff]
        %v238 = vld [vmem:[%s187 + $0x98] sm:$0xff]
        %v239 = vld [vmem:[%s187 + $0xa0] sm:$0xff]
        %v240 = vld [vmem:[%s187 + $0xa8] sm:$0xff]
        %v241 = vld [vmem:[%s187 + $0xb0] sm:$0xff]
        %v242 = vld [vmem:[%s187 + $0xb8] sm:$0xff]
        %v243 = vld [vmem:[%s187 + $0xc0] sm:$0xff]
        %v244 = vld [vmem:[%s187 + $0xc8] sm:$0xff]
        %v245 = vld [vmem:[%s187 + $0xd0] sm:$0xff]
        %v246 = vld [vmem:[%s187 + $0xd8] sm:$0xff]
        %v247 = vld [vmem:[%s187 + $0xe0] sm:$0xff]
        %v248 = vld [vmem:[%s187 + $0xe8] sm:$0xff]
        %v249 = vld [vmem:[%s187 + $0xf0] sm:$0xff]
        %v250 = vld [vmem:[%s187 + $0xf8] sm:$0xff]
        %v251 = vld [vmem:[%s187 + $0x100] sm:$0xff]
        %v252 = vld [vmem:[%s187 + $0x108] sm:$0xff]
        %v253 = vld [vmem:[%s187 + $0x110] sm:$0xff]
        %v254 = vld [vmem:[%s187 + $0x118] sm:$0xff]
        %v255 = vld [vmem:[%s187 + $0x120] sm:$0xff]
        %v256 = vld [vmem:[%s187 + $0x128] sm:$0xff]
        %v257 = vld [vmem:[%s187 + $0x130] sm:$0xff]
        %v258 = vld [vmem:[%s187 + $0x138] sm:$0xff]
        %v259 = vld [vmem:[%s187 + $0x140] sm:$0xff]
        %v260 = vld [vmem:[%s187 + $0x148] sm:$0xff]
        %v261 = vld [vmem:[%s187 + $0x150] sm:$0xff]
        %v262 = vld [vmem:[%s187 + $0x158] sm:$0xff]
        %v263 = vld [vmem:[%s187 + $0x160] sm:$0xff]
        %v264 = vld [vmem:[%s187 + $0x168] sm:$0xff]
        %v265 = vld [vmem:[%s187 + $0x170] sm:$0xff]
        %v266 = vld [vmem:[%s187 + $0x178] sm:$0xff]
        %v267 = vpack.c.bf16 %v222, %v219
        %v268 = vpack.c.bf16 %v223, %v220
        %v269 = vpack.c.bf16 %v224, %v221
        %v270 = vpack.c.bf16 %v228, %v225
        %v271 = vpack.c.bf16 %v229, %v226
        %v272 = vpack.c.bf16 %v230, %v227
        %v273 = vpack.c.bf16 %v234, %v231
        %v274 = vpack.c.bf16 %v235, %v232
        %v275 = vpack.c.bf16 %v236, %v233
        %v276 = vpack.c.bf16 %v240, %v237
        %v277 = vpack.c.bf16 %v241, %v238
        %v278 = vpack.c.bf16 %v242, %v239
        %v279 = vpack.c.bf16 %v246, %v243
        %v280 = vpack.c.bf16 %v247, %v244
        %v281 = vpack.c.bf16 %v248, %v245
        %v282 = vpack.c.bf16 %v252, %v249
        %v283 = vpack.c.bf16 %v253, %v250
        %v284 = vpack.c.bf16 %v254, %v251
        %v285 = vpack.c.bf16 %v258, %v255
        %v286 = vpack.c.bf16 %v259, %v256
        %v287 = vpack.c.bf16 %v260, %v257
        %v288 = vpack.c.bf16 %v264, %v261
        %v289 = vpack.c.bf16 %v265, %v262
        %v290 = vpack.c.bf16 %v266, %v263
        %v291 = vld [vmem:[#allocation5] sm:$0xff]
        %v292 = vld [vmem:[#allocation5 + $0x8] sm:$0xf]
        %v293 = vld [vmem:[#allocation5 + $0xc] sm:$0xff]
        %v294 = vld [vmem:[#allocation5 + $0x14] sm:$0xf]
        %v295 = vld [vmem:[#allocation5 + $0x18] sm:$0xff]
        %v296 = vld [vmem:[#allocation5 + $0x20] sm:$0xf]
        %v297 = vld [vmem:[#allocation5 + $0x24] sm:$0xff]
        %v298 = vld [vmem:[#allocation5 + $0x2c] sm:$0xf]
        %v299 = vld [vmem:[#allocation5 + $0x30] sm:$0xff]
        %v300 = vld [vmem:[#allocation5 + $0x38] sm:$0xf]
        %v301 = vld [vmem:[#allocation5 + $0x3c] sm:$0xff]
        %v302 = vld [vmem:[#allocation5 + $0x44] sm:$0xf]
        %v303 = vld [vmem:[#allocation5 + $0x48] sm:$0xff]
        %v304 = vld [vmem:[#allocation5 + $0x50] sm:$0xf]
        %v305 = vld [vmem:[#allocation5 + $0x54] sm:$0xff]
        %v306 = vld [vmem:[#allocation5 + $0x5c] sm:$0xf]
        %v307 = vld [vmem:[#allocation5 + $0x60] sm:$0xff]
        %v308 = vld [vmem:[#allocation5 + $0x68] sm:$0xf]
        %v309 = vld [vmem:[#allocation5 + $0x6c] sm:$0xff]
        %v310 = vld [vmem:[#allocation5 + $0x74] sm:$0xf]
        %v311 = vld [vmem:[#allocation5 + $0x78] sm:$0xff]
        %v312 = vld [vmem:[#allocation5 + $0x80] sm:$0xf]
        %v313 = vld [vmem:[#allocation5 + $0x84] sm:$0xff]
        %v314 = vld [vmem:[#allocation5 + $0x8c] sm:$0xf]
        %v315 = vld [vmem:[#allocation5 + $0x90] sm:$0xff]
        %v316 = vld [vmem:[#allocation5 + $0x98] sm:$0xf]
        %v317 = vld [vmem:[#allocation5 + $0x9c] sm:$0xff]
        %v318 = vld [vmem:[#allocation5 + $0xa4] sm:$0xf]
        %v319 = vld [vmem:[#allocation5 + $0xa8] sm:$0xff]
        %v320 = vld [vmem:[#allocation5 + $0xb0] sm:$0xf]
        %v321 = vld [vmem:[#allocation5 + $0xb4] sm:$0xff]
        %v322 = vld [vmem:[#allocation5 + $0xbc] sm:$0xf]
        %v323 = vld [vmem:[#allocation5 + $0xc0] sm:$0xff]
        %v324 = vld [vmem:[#allocation5 + $0xc8] sm:$0xf]
        %v325 = vld [vmem:[#allocation5 + $0xcc] sm:$0xff]
        %v326 = vld [vmem:[#allocation5 + $0xd4] sm:$0xf]
        %v327 = vld [vmem:[#allocation5 + $0xd8] sm:$0xff]
        %v328 = vld [vmem:[#allocation5 + $0xe0] sm:$0xf]
        %v329 = vld [vmem:[#allocation5 + $0xe4] sm:$0xff]
        %v330 = vld [vmem:[#allocation5 + $0xec] sm:$0xf]
        %v331 = vld [vmem:[#allocation5 + $0xf0] sm:$0xff]
        %v332 = vld [vmem:[#allocation5 + $0xf8] sm:$0xf]
        %v333 = vld [vmem:[#allocation5 + $0xfc] sm:$0xff]
        %v334 = vld [vmem:[#allocation5 + $0x104] sm:$0xf]
        %v335 = vld [vmem:[#allocation5 + $0x108] sm:$0xff]
        %v336 = vld [vmem:[#allocation5 + $0x110] sm:$0xf]
        %v337 = vld [vmem:[#allocation5 + $0x114] sm:$0xff]
        %v338 = vld [vmem:[#allocation5 + $0x11c] sm:$0xf]
        %v339 = vld [vmem:[#allocation5 + $0x120] sm:$0xff]
        %v340 = vld [vmem:[#allocation5 + $0x128] sm:$0xf]
        %v341 = vld [vmem:[#allocation5 + $0x12c] sm:$0xff]
        %v342 = vld [vmem:[#allocation5 + $0x134] sm:$0xf]
        %v343 = vld [vmem:[#allocation5 + $0x138] sm:$0xff]
        %v344 = vld [vmem:[#allocation5 + $0x140] sm:$0xf]
        %v345 = vld [vmem:[#allocation5 + $0x144] sm:$0xff]
        %v346 = vld [vmem:[#allocation5 + $0x14c] sm:$0xf]
        %v347 = vld [vmem:[#allocation5 + $0x150] sm:$0xff]
        %v348 = vld [vmem:[#allocation5 + $0x158] sm:$0xf]
        %v349 = vld [vmem:[#allocation5 + $0x15c] sm:$0xff]
        %v350 = vld [vmem:[#allocation5 + $0x164] sm:$0xf]
        %v351 = vld [vmem:[#allocation5 + $0x168] sm:$0xff]
        %v352 = vld [vmem:[#allocation5 + $0x170] sm:$0xf]
        %v353 = vld [vmem:[#allocation5 + $0x174] sm:$0xff]
        %v354 = vld [vmem:[#allocation5 + $0x17c] sm:$0xf]
        %v355 = vld [vmem:[#allocation5 + $0x180] sm:$0xff]
        %v356 = vld [vmem:[#allocation5 + $0x188] sm:$0xf]
        %v357 = vld [vmem:[#allocation5 + $0x18c] sm:$0xff]
        %v358 = vld [vmem:[#allocation5 + $0x194] sm:$0xf]
        %v359 = vld [vmem:[#allocation5 + $0x198] sm:$0xff]
        %v360 = vld [vmem:[#allocation5 + $0x1a0] sm:$0xf]
        %v361 = vld [vmem:[#allocation5 + $0x1a4] sm:$0xff]
        %v362 = vld [vmem:[#allocation5 + $0x1ac] sm:$0xf]
        %v363 = vld [vmem:[#allocation5 + $0x1b0] sm:$0xff]
        %v364 = vld [vmem:[#allocation5 + $0x1b8] sm:$0xf]
        %v365 = vld [vmem:[#allocation5 + $0x1bc] sm:$0xff]
        %v366 = vld [vmem:[#allocation5 + $0x1c4] sm:$0xf]
        %v367 = vld [vmem:[#allocation5 + $0x1c8] sm:$0xff]
        %v368 = vld [vmem:[#allocation5 + $0x1d0] sm:$0xf]
        %v369 = vld [vmem:[#allocation5 + $0x1d4] sm:$0xff]
        %v370 = vld [vmem:[#allocation5 + $0x1dc] sm:$0xf]
        %v371 = vld [vmem:[#allocation5 + $0x1e0] sm:$0xff]
        %v372 = vld [vmem:[#allocation5 + $0x1e8] sm:$0xf]
        %v373 = vld [vmem:[#allocation5 + $0x1ec] sm:$0xff]
        %v374 = vld [vmem:[#allocation5 + $0x1f4] sm:$0xf]
        %v375 = vld [vmem:[#allocation5 + $0x1f8] sm:$0xff]
        %v376 = vld [vmem:[#allocation5 + $0x200] sm:$0xf]
        %v377 = vld [vmem:[#allocation5 + $0x204] sm:$0xff]
        %v378 = vld [vmem:[#allocation5 + $0x20c] sm:$0xf]
        %v379 = vld [vmem:[#allocation5 + $0x210] sm:$0xff]
        %v380 = vld [vmem:[#allocation5 + $0x218] sm:$0xf]
        %v381 = vld [vmem:[#allocation5 + $0x21c] sm:$0xff]
        %v382 = vld [vmem:[#allocation5 + $0x224] sm:$0xf]
        %v383 = vld [vmem:[#allocation5 + $0x228] sm:$0xff]
        %v384 = vld [vmem:[#allocation5 + $0x230] sm:$0xf]
        %v385 = vld [vmem:[#allocation5 + $0x234] sm:$0xff]
        %v386 = vld [vmem:[#allocation5 + $0x23c] sm:$0xf]
        %v483 = vunpack.c.l.b16 %v291
        %v484 = vunpack.c.h.b16 %v291
        %v485 = vunpack.c.l.b16 %v292
        %v486 = vunpack.c.l.b16 %v293
        %v487 = vunpack.c.h.b16 %v293
        %v488 = vunpack.c.l.b16 %v294
        %v489 = vunpack.c.l.b16 %v295
        %v490 = vunpack.c.h.b16 %v295
        %v491 = vunpack.c.l.b16 %v296
        %v492 = vunpack.c.l.b16 %v297
        %v493 = vunpack.c.h.b16 %v297
        %v494 = vunpack.c.l.b16 %v298
        %v495 = vunpack.c.l.b16 %v299
        %v496 = vunpack.c.h.b16 %v299
        %v497 = vunpack.c.l.b16 %v300
        %v498 = vunpack.c.l.b16 %v301
        %v499 = vunpack.c.h.b16 %v301
        %v500 = vunpack.c.l.b16 %v302
        %v501 = vunpack.c.l.b16 %v303
        %v502 = vunpack.c.h.b16 %v303
        %v503 = vunpack.c.l.b16 %v304
        %v504 = vunpack.c.l.b16 %v305
        %v505 = vunpack.c.h.b16 %v305
        %v506 = vunpack.c.l.b16 %v306
        %v507 = vunpack.c.l.b16 %v307
        %v508 = vunpack.c.h.b16 %v307
        %v509 = vunpack.c.l.b16 %v308
        %v510 = vunpack.c.l.b16 %v309
        %v511 = vunpack.c.h.b16 %v309
        %v512 = vunpack.c.l.b16 %v310
        %v513 = vunpack.c.l.b16 %v311
        %v514 = vunpack.c.h.b16 %v311
        %v515 = vunpack.c.l.b16 %v312
        %v516 = vunpack.c.l.b16 %v313
        %v517 = vunpack.c.h.b16 %v313
        %v518 = vunpack.c.l.b16 %v314
        %v519 = vunpack.c.l.b16 %v315
        %v520 = vunpack.c.h.b16 %v315
        %v521 = vunpack.c.l.b16 %v316
        %v522 = vunpack.c.l.b16 %v317
        %v523 = vunpack.c.h.b16 %v317
        %v524 = vunpack.c.l.b16 %v318
        %v525 = vunpack.c.l.b16 %v319
        %v526 = vunpack.c.h.b16 %v319
        %v527 = vunpack.c.l.b16 %v320
        %v528 = vunpack.c.l.b16 %v321
        %v529 = vunpack.c.h.b16 %v321
        %v530 = vunpack.c.l.b16 %v322
        %v531 = vunpack.c.l.b16 %v323
        %v532 = vunpack.c.h.b16 %v323
        %v533 = vunpack.c.l.b16 %v324
        %v534 = vunpack.c.l.b16 %v325
        %v535 = vunpack.c.h.b16 %v325
        %v536 = vunpack.c.l.b16 %v326
        %v537 = vunpack.c.l.b16 %v327
        %v538 = vunpack.c.h.b16 %v327
        %v539 = vunpack.c.l.b16 %v328
        %v540 = vunpack.c.l.b16 %v329
        %v541 = vunpack.c.h.b16 %v329
        %v542 = vunpack.c.l.b16 %v330
        %v543 = vunpack.c.l.b16 %v331
        %v544 = vunpack.c.h.b16 %v331
        %v545 = vunpack.c.l.b16 %v332
        %v546 = vunpack.c.l.b16 %v333
        %v547 = vunpack.c.h.b16 %v333
        %v548 = vunpack.c.l.b16 %v334
        %v549 = vunpack.c.l.b16 %v335
        %v550 = vunpack.c.h.b16 %v335
        %v551 = vunpack.c.l.b16 %v336
        %v552 = vunpack.c.l.b16 %v337
        %v553 = vunpack.c.h.b16 %v337
        %v554 = vunpack.c.l.b16 %v338
        %v555 = vunpack.c.l.b16 %v339
        %v556 = vunpack.c.h.b16 %v339
        %v557 = vunpack.c.l.b16 %v340
        %v558 = vunpack.c.l.b16 %v341
        %v559 = vunpack.c.h.b16 %v341
        %v560 = vunpack.c.l.b16 %v342
        %v561 = vunpack.c.l.b16 %v343
        %v562 = vunpack.c.h.b16 %v343
        %v563 = vunpack.c.l.b16 %v344
        %v564 = vunpack.c.l.b16 %v345
        %v565 = vunpack.c.h.b16 %v345
        %v566 = vunpack.c.l.b16 %v346
        %v567 = vunpack.c.l.b16 %v347
        %v568 = vunpack.c.h.b16 %v347
        %v569 = vunpack.c.l.b16 %v348
        %v570 = vunpack.c.l.b16 %v349
        %v571 = vunpack.c.h.b16 %v349
        %v572 = vunpack.c.l.b16 %v350
        %v573 = vunpack.c.l.b16 %v351
        %v574 = vunpack.c.h.b16 %v351
        %v575 = vunpack.c.l.b16 %v352
        %v576 = vunpack.c.l.b16 %v353
        %v577 = vunpack.c.h.b16 %v353
        %v578 = vunpack.c.l.b16 %v354
        %v579 = vunpack.c.l.b16 %v355
        %v580 = vunpack.c.h.b16 %v355
        %v581 = vunpack.c.l.b16 %v356
        %v582 = vunpack.c.l.b16 %v357
        %v583 = vunpack.c.h.b16 %v357
        %v584 = vunpack.c.l.b16 %v358
        %v585 = vunpack.c.l.b16 %v359
        %v586 = vunpack.c.h.b16 %v359
        %v587 = vunpack.c.l.b16 %v360
        %v588 = vunpack.c.l.b16 %v361
        %v589 = vunpack.c.h.b16 %v361
        %v590 = vunpack.c.l.b16 %v362
        %v591 = vunpack.c.l.b16 %v363
        %v592 = vunpack.c.h.b16 %v363
        %v593 = vunpack.c.l.b16 %v364
        %v594 = vunpack.c.l.b16 %v365
        %v595 = vunpack.c.h.b16 %v365
        %v596 = vunpack.c.l.b16 %v366
        %v597 = vunpack.c.l.b16 %v367
        %v598 = vunpack.c.h.b16 %v367
        %v599 = vunpack.c.l.b16 %v368
        %v600 = vunpack.c.l.b16 %v369
        %v601 = vunpack.c.h.b16 %v369
        %v602 = vunpack.c.l.b16 %v370
        %v603 = vunpack.c.l.b16 %v371
        %v604 = vunpack.c.h.b16 %v371
        %v605 = vunpack.c.l.b16 %v372
        %v606 = vunpack.c.l.b16 %v373
        %v607 = vunpack.c.h.b16 %v373
        %v608 = vunpack.c.l.b16 %v374
        %v609 = vunpack.c.l.b16 %v375
        %v610 = vunpack.c.h.b16 %v375
        %v611 = vunpack.c.l.b16 %v376
        %v612 = vunpack.c.l.b16 %v377
        %v613 = vunpack.c.h.b16 %v377
        %v614 = vunpack.c.l.b16 %v378
        %v615 = vunpack.c.l.b16 %v379
        %v616 = vunpack.c.h.b16 %v379
        %v617 = vunpack.c.l.b16 %v380
        %v618 = vunpack.c.l.b16 %v381
        %v619 = vunpack.c.h.b16 %v381
        %v620 = vunpack.c.l.b16 %v382
        %v621 = vunpack.c.l.b16 %v383
        %v622 = vunpack.c.h.b16 %v383
        %v623 = vunpack.c.l.b16 %v384
        %v624 = vunpack.c.l.b16 %v385
        %v625 = vunpack.c.h.b16 %v385
        %v626 = vunpack.c.l.b16 %v386
        %v627 = vpack.c.b16 %v486, %v483
        %v628 = vpack.c.b16 %v487, %v484
        %v629 = vpack.c.b16 %v488, %v485
        %v630 = vpack.c.b16 %v492, %v489
        %v631 = vpack.c.b16 %v493, %v490
        %v632 = vpack.c.b16 %v494, %v491
        %v633 = vpack.c.b16 %v498, %v495
        %v634 = vpack.c.b16 %v499, %v496
        %v635 = vpack.c.b16 %v500, %v497
        %v636 = vpack.c.b16 %v504, %v501
        %v637 = vpack.c.b16 %v505, %v502
        %v638 = vpack.c.b16 %v506, %v503
        %v639 = vpack.c.b16 %v510, %v507
        %v640 = vpack.c.b16 %v511, %v508
        %v641 = vpack.c.b16 %v512, %v509
        %v642 = vpack.c.b16 %v516, %v513
        %v643 = vpack.c.b16 %v517, %v514
        %v644 = vpack.c.b16 %v518, %v515
        %v645 = vpack.c.b16 %v522, %v519
        %v646 = vpack.c.b16 %v523, %v520
        %v647 = vpack.c.b16 %v524, %v521
        %v648 = vpack.c.b16 %v528, %v525
        %v649 = vpack.c.b16 %v529, %v526
        %v650 = vpack.c.b16 %v530, %v527
        %v651 = vpack.c.b16 %v534, %v531
        %v652 = vpack.c.b16 %v535, %v532
        %v653 = vpack.c.b16 %v536, %v533
        %v654 = vpack.c.b16 %v540, %v537
        %v655 = vpack.c.b16 %v541, %v538
        %v656 = vpack.c.b16 %v542, %v539
        %v657 = vpack.c.b16 %v546, %v543
        %v658 = vpack.c.b16 %v547, %v544
        %v659 = vpack.c.b16 %v548, %v545
        %v660 = vpack.c.b16 %v552, %v549
        %v661 = vpack.c.b16 %v553, %v550
        %v662 = vpack.c.b16 %v554, %v551
        %v663 = vpack.c.b16 %v558, %v555
        %v664 = vpack.c.b16 %v559, %v556
        %v665 = vpack.c.b16 %v560, %v557
        %v666 = vpack.c.b16 %v564, %v561
        %v667 = vpack.c.b16 %v565, %v562
        %v668 = vpack.c.b16 %v566, %v563
        %v669 = vpack.c.b16 %v570, %v567
        %v670 = vpack.c.b16 %v571, %v568
        %v671 = vpack.c.b16 %v572, %v569
        %v672 = vpack.c.b16 %v576, %v573
        %v673 = vpack.c.b16 %v577, %v574
        %v674 = vpack.c.b16 %v578, %v575
        %v675 = vpack.c.b16 %v582, %v579
        %v676 = vpack.c.b16 %v583, %v580
        %v677 = vpack.c.b16 %v584, %v581
        %v678 = vpack.c.b16 %v588, %v585
        %v679 = vpack.c.b16 %v589, %v586
        %v680 = vpack.c.b16 %v590, %v587
        %v681 = vpack.c.b16 %v594, %v591
        %v682 = vpack.c.b16 %v595, %v592
        %v683 = vpack.c.b16 %v596, %v593
        %v684 = vpack.c.b16 %v600, %v597
        %v685 = vpack.c.b16 %v601, %v598
        %v686 = vpack.c.b16 %v602, %v599
        %v687 = vpack.c.b16 %v606, %v603
        %v688 = vpack.c.b16 %v607, %v604
        %v689 = vpack.c.b16 %v608, %v605
        %v690 = vpack.c.b16 %v612, %v609
        %v691 = vpack.c.b16 %v613, %v610
        %v692 = vpack.c.b16 %v614, %v611
        %v693 = vpack.c.b16 %v618, %v615
        %v694 = vpack.c.b16 %v619, %v616
        %v695 = vpack.c.b16 %v620, %v617
        %v696 = vpack.c.b16 %v624, %v621
        %v697 = vpack.c.b16 %v625, %v622
        %v698 = vpack.c.b16 %v626, %v623
        %771 = vmatprep.subr.bf16.mxu0 %v628
        %772 = vmatpush1.bf16.msra.mxu0 %v627
        %773 = vmatprep.subr.bf16.mxu0 %v631
        %774 = vmatpush1.bf16.msra.mxu0 %v630
        %775 = vmatprep.subr.bf16.mxu0 %v634
        %776 = vmatpush1.bf16.msra.mxu0 %v633
        %777 = vmatprep.subr.bf16.mxu0 %v637
        %778 = vmatpush1.bf16.msra.mxu0 %v636
        %779 = vmatprep.subr.bf16.mxu0 %v640
        %780 = vmatpush1.bf16.msra.mxu0 %v639
        %781 = vmatprep.subr.bf16.mxu0 %v643
        %782 = vmatpush1.bf16.msra.mxu0 %v642
        %783 = vmatprep.subr.bf16.mxu0 %v646
        %784 = vmatpush1.bf16.msra.mxu0 %v645
        %785 = vmatprep.subr.bf16.mxu0 %v649
        %786 = vmatpush1.bf16.msra.mxu0 %v648
        %787 = vmatprep.subr.bf16.mxu0 %v652
        %788 = vmatpush1.bf16.msra.mxu0 %v651
        %789 = vmatprep.subr.bf16.mxu0 %v655
        %790 = vmatpush1.bf16.msra.mxu0 %v654
        %791 = vmatprep.subr.bf16.mxu0 %v658
        %792 = vmatpush1.bf16.msra.mxu0 %v657
        %793 = vmatprep.subr.bf16.mxu0 %v661
        %794 = vmatpush1.bf16.msra.mxu0 %v660
        %795 = vmatprep.subr.bf16.mxu0 %v664
        %796 = vmatpush1.bf16.msra.mxu0 %v663
        %797 = vmatprep.subr.bf16.mxu0 %v667
        %798 = vmatpush1.bf16.msra.mxu0 %v666
        %799 = vmatprep.subr.bf16.mxu0 %v670
        %800 = vmatpush1.bf16.msra.mxu0 %v669
        %801 = vmatprep.subr.bf16.mxu0 %v673
        %802 = vmatpush1.bf16.msra.mxu0 %v672
        %803 = vmatprep.mubr.bf16.mxu0 %v268
        %804 = vmatmul.mubr.bf16.gmra.mrb[0].mxu0 %v267
        %v805 = vpop.f32.mrb[0].mxu0
        %v806 = vadd.f32 0.0, %v805
        %v807 = vpop.f32.mrb[0].mxu0
        %v808 = vadd.f32 0.0, %v807
        %v809 = vpop.f32.mrb[0].mxu0
        %v810 = vadd.f32 0.0, %v809
        %v811 = vpop.f32.mrb[0].mxu0
        %v812 = vadd.f32 0.0, %v811
        %813 = vmatprep.mubr.bf16.mxu0 %v271
        %814 = vmatmul.mubr.bf16.gmra.mrb[0].mxu0 %v270
        %v815 = vpop.f32.mrb[0].mxu0
        %v816 = vadd.f32 0.0, %v815
        %v817 = vpop.f32.mrb[0].mxu0
        %v818 = vadd.f32 0.0, %v817
        %v819 = vpop.f32.mrb[0].mxu0
        %v820 = vadd.f32 0.0, %v819
        %v821 = vpop.f32.mrb[0].mxu0
        %v822 = vadd.f32 0.0, %v821
        %823 = vmatprep.mubr.bf16.mxu0 %v274
        %824 = vmatmul.mubr.bf16.gmra.mrb[0].mxu0 %v273
        %v825 = vpop.f32.mrb[0].mxu0
        %v826 = vadd.f32 0.0, %v825
        %v827 = vpop.f32.mrb[0].mxu0
        %v828 = vadd.f32 0.0, %v827
        %v829 = vpop.f32.mrb[0].mxu0
        %v830 = vadd.f32 0.0, %v829
        %v831 = vpop.f32.mrb[0].mxu0
        %v832 = vadd.f32 0.0, %v831
        %833 = vmatprep.mubr.bf16.mxu0 %v277
        %834 = vmatmul.mubr.bf16.gmra.mrb[0].mxu0 %v276
        %v835 = vpop.f32.mrb[0].mxu0
        %v836 = vadd.f32 0.0, %v835
        %v837 = vpop.f32.mrb[0].mxu0
        %v838 = vadd.f32 0.0, %v837
        %v839 = vpop.f32.mrb[0].mxu0
        %v840 = vadd.f32 0.0, %v839
        %v841 = vpop.f32.mrb[0].mxu0
        %v842 = vadd.f32 0.0, %v841
        %843 = vmatprep.mubr.bf16.mxu0 %v280
        %844 = vmatmul.mubr.bf16.gmra.mrb[0].mxu0 %v279
        %v845 = vpop.f32.mrb[0].mxu0
        %v846 = vadd.f32 0.0, %v845
        %v847 = vpop.f32.mrb[0].mxu0
        %v848 = vadd.f32 0.0, %v847
        %v849 = vpop.f32.mrb[0].mxu0
        %v850 = vadd.f32 0.0, %v849
        %v851 = vpop.f32.mrb[0].mxu0
        %v852 = vadd.f32 0.0, %v851
        %853 = vmatprep.mubr.bf16.mxu0 %v283
        %854 = vmatmul.mubr.bf16.gmra.mrb[0].mxu0 %v282
        %v855 = vpop.f32.mrb[0].mxu0
        %v856 = vadd.f32 0.0, %v855
        %v857 = vpop.f32.mrb[0].mxu0
        %v858 = vadd.f32 0.0, %v857
        %v859 = vpop.f32.mrb[0].mxu0
        %v860 = vadd.f32 0.0, %v859
        %v861 = vpop.f32.mrb[0].mxu0
        %v862 = vadd.f32 0.0, %v861
        %863 = vmatprep.mubr.bf16.mxu0 %v286
        %864 = vmatmul.mubr.bf16.gmra.mrb[0].mxu0 %v285
        %v865 = vpop.f32.mrb[0].mxu0
        %v866 = vadd.f32 0.0, %v865
        %v867 = vpop.f32.mrb[0].mxu0
        %v868 = vadd.f32 0.0, %v867
        %v869 = vpop.f32.mrb[0].mxu0
        %v870 = vadd.f32 0.0, %v869
        %v871 = vpop.f32.mrb[0].mxu0
        %v872 = vadd.f32 0.0, %v871
        %873 = vmatprep.mubr.bf16.mxu0 %v289
        %874 = vmatmul.mubr.bf16.gmra.mrb[0].mxu0 %v288
        %v875 = vpop.f32.mrb[0].mxu0
        %v876 = vadd.f32 0.0, %v875
        %v877 = vpop.f32.mrb[0].mxu0
        %v878 = vadd.f32 0.0, %v877
        %v879 = vpop.f32.mrb[0].mxu0
        %v880 = vadd.f32 0.0, %v879
        %v881 = vpop.f32.mrb[0].mxu0
        %v882 = vadd.f32 0.0, %v881
        %883 = vdwg.mxu0
        %884 = vmatprep.subr.bf16.mxu0 %v676
        %885 = vmatpush1.bf16.msra.mxu0 %v675
        %886 = vmatprep.subr.bf16.mxu0 %v679
        %887 = vmatpush1.bf16.msra.mxu0 %v678
        %888 = vmatprep.subr.bf16.mxu0 %v682
        %889 = vmatpush1.bf16.msra.mxu0 %v681
        %890 = vmatprep.subr.bf16.mxu0 %v685
        %891 = vmatpush1.bf16.msra.mxu0 %v684
        %892 = vmatprep.subr.bf16.mxu0 %v688
        %893 = vmatpush1.bf16.msra.mxu0 %v687
        %894 = vmatprep.subr.bf16.mxu0 %v691
        %895 = vmatpush1.bf16.msra.mxu0 %v690
        %896 = vmatprep.subr.bf16.mxu0 %v694
        %897 = vmatpush1.bf16.msra.mxu0 %v693
        %898 = vmatprep.subr.bf16.mxu0 %v697
        %899 = vmatpush1.bf16.msra.mxu0 %v696
        %900 = vmatprep.subr.bf16.mxu0 0
        %901 = vmatpush1.bf16.msra.mxu0 0
        %902 = vmatprep.subr.bf16.mxu0 0
        %903 = vmatpush1.bf16.msra.mxu0 0
        %904 = vmatprep.subr.bf16.mxu0 0
        %905 = vmatpush1.bf16.msra.mxu0 0
        %906 = vmatprep.subr.bf16.mxu0 0
        %907 = vmatpush1.bf16.msra.mxu0 0
        %908 = vmatprep.subr.bf16.mxu0 0
        %909 = vmatpush1.bf16.msra.mxu0 0
        %910 = vmatprep.subr.bf16.mxu0 0
        %911 = vmatpush1.bf16.msra.mxu0 0
        %912 = vmatprep.subr.bf16.mxu0 0
        %913 = vmatpush1.bf16.msra.mxu0 0
        %914 = vmatprep.subr.bf16.mxu0 0
        %915 = vmatpush1.bf16.msra.mxu0 0
        %916 = vmatprep.mubr.bf16.mxu0 0
        %917 = vmatmul.mubr.bf16.gmra.mrb[0].mxu0 %v269
        %v918 = vpop.f32.mrb[0].mxu0
        %v919 = vadd.f32 %v806, %v918
        %v920 = vpop.f32.mrb[0].mxu0
        %v921 = vadd.f32 %v808, %v920
        %v922 = vpop.f32.mrb[0].mxu0
        %v923 = vadd.f32 %v810, %v922
        %v924 = vpop.f32.mrb[0].mxu0
        %v925 = vadd.f32 %v812, %v924
        %926 = vmatprep.mubr.bf16.mxu0 0
        %927 = vmatmul.mubr.bf16.gmra.mrb[0].mxu0 %v272
        %v928 = vpop.f32.mrb[0].mxu0
        %v929 = vadd.f32 %v816, %v928
        %v930 = vpop.f32.mrb[0].mxu0
        %v931 = vadd.f32 %v818, %v930
        %v932 = vpop.f32.mrb[0].mxu0
        %v933 = vadd.f32 %v820, %v932
        %v934 = vpop.f32.mrb[0].mxu0
        %v935 = vadd.f32 %v822, %v934
        %936 = vmatprep.mubr.bf16.mxu0 0
        %937 = vmatmul.mubr.bf16.gmra.mrb[0].mxu0 %v275
        %v938 = vpop.f32.mrb[0].mxu0
        %v939 = vadd.f32 %v826, %v938
        %v940 = vpop.f32.mrb[0].mxu0
        %v941 = vadd.f32 %v828, %v940
        %v942 = vpop.f32.mrb[0].mxu0
        %v943 = vadd.f32 %v830, %v942
        %v944 = vpop.f32.mrb[0].mxu0
        %v945 = vadd.f32 %v832, %v944
        %946 = vmatprep.mubr.bf16.mxu0 0
        %947 = vmatmul.mubr.bf16.gmra.mrb[0].mxu0 %v278
        %v948 = vpop.f32.mrb[0].mxu0
        %v949 = vadd.f32 %v836, %v948
        %v950 = vpop.f32.mrb[0].mxu0
        %v951 = vadd.f32 %v838, %v950
        %v952 = vpop.f32.mrb[0].mxu0
        %v953 = vadd.f32 %v840, %v952
        %v954 = vpop.f32.mrb[0].mxu0
        %v955 = vadd.f32 %v842, %v954
        %956 = vmatprep.mubr.bf16.mxu0 0
        %957 = vmatmul.mubr.bf16.gmra.mrb[0].mxu0 %v281
        %v958 = vpop.f32.mrb[0].mxu0
        %v959 = vadd.f32 %v846, %v958
        %v960 = vpop.f32.mrb[0].mxu0
        %v961 = vadd.f32 %v848, %v960
        %v962 = vpop.f32.mrb[0].mxu0
        %v963 = vadd.f32 %v850, %v962
        %v964 = vpop.f32.mrb[0].mxu0
        %v965 = vadd.f32 %v852, %v964
        %966 = vmatprep.mubr.bf16.mxu0 0
        %967 = vmatmul.mubr.bf16.gmra.mrb[0].mxu0 %v284
        %v968 = vpop.f32.mrb[0].mxu0
        %v969 = vadd.f32 %v856, %v968
        %v970 = vpop.f32.mrb[0].mxu0
        %v971 = vadd.f32 %v858, %v970
        %v972 = vpop.f32.mrb[0].mxu0
        %v973 = vadd.f32 %v860, %v972
        %v974 = vpop.f32.mrb[0].mxu0
        %v975 = vadd.f32 %v862, %v974
        %976 = vmatprep.mubr.bf16.mxu0 0
        %977 = vmatmul.mubr.bf16.gmra.mrb[0].mxu0 %v287
        %v978 = vpop.f32.mrb[0].mxu0
        %v979 = vadd.f32 %v866, %v978
        %v980 = vpop.f32.mrb[0].mxu0
        %v981 = vadd.f32 %v868, %v980
        %v982 = vpop.f32.mrb[0].mxu0
        %v983 = vadd.f32 %v870, %v982
        %v984 = vpop.f32.mrb[0].mxu0
        %v985 = vadd.f32 %v872, %v984
        %986 = vmatprep.mubr.bf16.mxu0 0
        %987 = vmatmul.mubr.bf16.gmra.mrb[0].mxu0 %v290
        %v988 = vpop.f32.mrb[0].mxu0
        %v989 = vadd.f32 %v876, %v988
        %v990 = vpop.f32.mrb[0].mxu0
        %v991 = vadd.f32 %v878, %v990
        %v992 = vpop.f32.mrb[0].mxu0
        %v993 = vadd.f32 %v880, %v992
        %v994 = vpop.f32.mrb[0].mxu0
        %v995 = vadd.f32 %v882, %v994
        %996 = vdwg.mxu0
        %997 = vmatprep.subr.bf16.mxu0 0
        %998 = vmatpush1.bf16.msra.mxu0 %v629
        %999 = vmatprep.subr.bf16.mxu0 0
        %1000 = vmatpush1.bf16.msra.mxu0 %v632
        %1001 = vmatprep.subr.bf16.mxu0 0
        %1002 = vmatpush1.bf16.msra.mxu0 %v635
        %1003 = vmatprep.subr.bf16.mxu0 0
        %1004 = vmatpush1.bf16.msra.mxu0 %v638
        %1005 = vmatprep.subr.bf16.mxu0 0
        %1006 = vmatpush1.bf16.msra.mxu0 %v641
        %1007 = vmatprep.subr.bf16.mxu0 0
        %1008 = vmatpush1.bf16.msra.mxu0 %v644
        %1009 = vmatprep.subr.bf16.mxu0 0
        %1010 = vmatpush1.bf16.msra.mxu0 %v647
        %1011 = vmatprep.subr.bf16.mxu0 0
        %1012 = vmatpush1.bf16.msra.mxu0 %v650
        %1013 = vmatprep.subr.bf16.mxu0 0
        %1014 = vmatpush1.bf16.msra.mxu0 %v653
        %1015 = vmatprep.subr.bf16.mxu0 0
        %1016 = vmatpush1.bf16.msra.mxu0 %v656
        %1017 = vmatprep.subr.bf16.mxu0 0
        %1018 = vmatpush1.bf16.msra.mxu0 %v659
        %1019 = vmatprep.subr.bf16.mxu0 0
        %1020 = vmatpush1.bf16.msra.mxu0 %v662
        %1021 = vmatprep.subr.bf16.mxu0 0
        %1022 = vmatpush1.bf16.msra.mxu0 %v665
        %1023 = vmatprep.subr.bf16.mxu0 0
        %1024 = vmatpush1.bf16.msra.mxu0 %v668
        %1025 = vmatprep.subr.bf16.mxu0 0
        %1026 = vmatpush1.bf16.msra.mxu0 %v671
        %1027 = vmatprep.subr.bf16.mxu0 0
        %1028 = vmatpush1.bf16.msra.mxu0 %v674
        %1029 = vmatprep.mubr.bf16.mxu0 %v268
        %1030 = vmatmul.mubr.bf16.gmra.mrb[0].mxu0 %v267
        %v1031 = vpop.f32.mrb[0].mxu0
        %v1032 = vadd.f32 0.0, %v1031
        %v1033 = vpop.f32.mrb[0].mxu0
        %v1034 = vpop.f32.mrb[0].mxu0
        %v1035 = vadd.f32 0.0, %v1034
        %v1036 = vpop.f32.mrb[0].mxu0
        %1037 = vmatprep.mubr.bf16.mxu0 %v271
        %1038 = vmatmul.mubr.bf16.gmra.mrb[0].mxu0 %v270
        %v1039 = vpop.f32.mrb[0].mxu0
        %v1040 = vadd.f32 0.0, %v1039
        %v1041 = vpop.f32.mrb[0].mxu0
        %v1042 = vpop.f32.mrb[0].mxu0
        %v1043 = vadd.f32 0.0, %v1042
        %v1044 = vpop.f32.mrb[0].mxu0
        %1045 = vmatprep.mubr.bf16.mxu0 %v274
        %1046 = vmatmul.mubr.bf16.gmra.mrb[0].mxu0 %v273
        %v1047 = vpop.f32.mrb[0].mxu0
        %v1048 = vadd.f32 0.0, %v1047
        %v1049 = vpop.f32.mrb[0].mxu0
        %v1050 = vpop.f32.mrb[0].mxu0
        %v1051 = vadd.f32 0.0, %v1050
        %v1052 = vpop.f32.mrb[0].mxu0
        %1053 = vmatprep.mubr.bf16.mxu0 %v277
        %1054 = vmatmul.mubr.bf16.gmra.mrb[0].mxu0 %v276
        %v1055 = vpop.f32.mrb[0].mxu0
        %v1056 = vadd.f32 0.0, %v1055
        %v1057 = vpop.f32.mrb[0].mxu0
        %v1058 = vpop.f32.mrb[0].mxu0
        %v1059 = vadd.f32 0.0, %v1058
        %v1060 = vpop.f32.mrb[0].mxu0
        %1061 = vmatprep.mubr.bf16.mxu0 %v280
        %1062 = vmatmul.mubr.bf16.gmra.mrb[0].mxu0 %v279
        %v1063 = vpop.f32.mrb[0].mxu0
        %v1064 = vadd.f32 0.0, %v1063
        %v1065 = vpop.f32.mrb[0].mxu0
        %v1066 = vpop.f32.mrb[0].mxu0
        %v1067 = vadd.f32 0.0, %v1066
        %v1068 = vpop.f32.mrb[0].mxu0
        %1069 = vmatprep.mubr.bf16.mxu0 %v283
        %1070 = vmatmul.mubr.bf16.gmra.mrb[0].mxu0 %v282
        %v1071 = vpop.f32.mrb[0].mxu0
        %v1072 = vadd.f32 0.0, %v1071
        %v1073 = vpop.f32.mrb[0].mxu0
        %v1074 = vpop.f32.mrb[0].mxu0
        %v1075 = vadd.f32 0.0, %v1074
        %v1076 = vpop.f32.mrb[0].mxu0
        %1077 = vmatprep.mubr.bf16.mxu0 %v286
        %1078 = vmatmul.mubr.bf16.gmra.mrb[0].mxu0 %v285
        %v1079 = vpop.f32.mrb[0].mxu0
        %v1080 = vadd.f32 0.0, %v1079
        %v1081 = vpop.f32.mrb[0].mxu0
        %v1082 = vpop.f32.mrb[0].mxu0
        %v1083 = vadd.f32 0.0, %v1082
        %v1084 = vpop.f32.mrb[0].mxu0
        %1085 = vmatprep.mubr.bf16.mxu0 %v289
        %1086 = vmatmul.mubr.bf16.gmra.mrb[0].mxu0 %v288
        %v1087 = vpop.f32.mrb[0].mxu0
        %v1088 = vadd.f32 0.0, %v1087
        %v1089 = vpop.f32.mrb[0].mxu0
        %v1090 = vpop.f32.mrb[0].mxu0
        %v1091 = vadd.f32 0.0, %v1090
        %v1092 = vpop.f32.mrb[0].mxu0
        %1093 = vdwg.mxu0
        %1094 = vmatprep.subr.bf16.mxu0 0
        %1095 = vmatpush1.bf16.msra.mxu0 %v677
        %1096 = vmatprep.subr.bf16.mxu0 0
        %1097 = vmatpush1.bf16.msra.mxu0 %v680
        %1098 = vmatprep.subr.bf16.mxu0 0
        %1099 = vmatpush1.bf16.msra.mxu0 %v683
        %1100 = vmatprep.subr.bf16.mxu0 0
        %1101 = vmatpush1.bf16.msra.mxu0 %v686
        %1102 = vmatprep.subr.bf16.mxu0 0
        %1103 = vmatpush1.bf16.msra.mxu0 %v689
        %1104 = vmatprep.subr.bf16.mxu0 0
        %1105 = vmatpush1.bf16.msra.mxu0 %v692
        %1106 = vmatprep.subr.bf16.mxu0 0
        %1107 = vmatpush1.bf16.msra.mxu0 %v695
        %1108 = vmatprep.subr.bf16.mxu0 0
        %1109 = vmatpush1.bf16.msra.mxu0 %v698
        %1110 = vmatprep.subr.bf16.mxu0 0
        %1111 = vmatpush1.bf16.msra.mxu0 0
        %1112 = vmatprep.subr.bf16.mxu0 0
        %1113 = vmatpush1.bf16.msra.mxu0 0
        %1114 = vmatprep.subr.bf16.mxu0 0
        %1115 = vmatpush1.bf16.msra.mxu0 0
        %1116 = vmatprep.subr.bf16.mxu0 0
        %1117 = vmatpush1.bf16.msra.mxu0 0
        %1118 = vmatprep.subr.bf16.mxu0 0
        %1119 = vmatpush1.bf16.msra.mxu0 0
        %1120 = vmatprep.subr.bf16.mxu0 0
        %1121 = vmatpush1.bf16.msra.mxu0 0
        %1122 = vmatprep.subr.bf16.mxu0 0
        %1123 = vmatpush1.bf16.msra.mxu0 0
        %1124 = vmatprep.subr.bf16.mxu0 0
        %1125 = vmatpush1.bf16.msra.mxu0 0
        %1126 = vmatprep.mubr.bf16.mxu0 0
        %1127 = vmatmul.mubr.bf16.gmra.mrb[0].mxu0 %v269
        %v1128 = vpop.f32.mrb[0].mxu0
        %v1129 = vadd.f32 %v1032, %v1128
        %v1130 = vpop.f32.mrb[0].mxu0
        %v1131 = vpop.f32.mrb[0].mxu0
        %v1132 = vadd.f32 %v1035, %v1131
        %v1133 = vpop.f32.mrb[0].mxu0
        %1134 = vmatprep.mubr.bf16.mxu0 0
        %1135 = vmatmul.mubr.bf16.gmra.mrb[0].mxu0 %v272
        %v1136 = vpop.f32.mrb[0].mxu0
        %v1137 = vadd.f32 %v1040, %v1136
        %v1138 = vpop.f32.mrb[0].mxu0
        %v1139 = vpop.f32.mrb[0].mxu0
        %v1140 = vadd.f32 %v1043, %v1139
        %v1141 = vpop.f32.mrb[0].mxu0
        %1142 = vmatprep.mubr.bf16.mxu0 0
        %1143 = vmatmul.mubr.bf16.gmra.mrb[0].mxu0 %v275
        %v1144 = vpop.f32.mrb[0].mxu0
        %v1145 = vadd.f32 %v1048, %v1144
        %v1146 = vpop.f32.mrb[0].mxu0
        %v1147 = vpop.f32.mrb[0].mxu0
        %v1148 = vadd.f32 %v1051, %v1147
        %v1149 = vpop.f32.mrb[0].mxu0
        %1150 = vmatprep.mubr.bf16.mxu0 0
        %1151 = vmatmul.mubr.bf16.gmra.mrb[0].mxu0 %v278
        %v1152 = vpop.f32.mrb[0].mxu0
        %v1153 = vadd.f32 %v1056, %v1152
        %v1154 = vpop.f32.mrb[0].mxu0
        %v1155 = vpop.f32.mrb[0].mxu0
        %v1156 = vadd.f32 %v1059, %v1155
        %v1157 = vpop.f32.mrb[0].mxu0
        %1158 = vmatprep.mubr.bf16.mxu0 0
        %1159 = vmatmul.mubr.bf16.gmra.mrb[0].mxu0 %v281
        %v1160 = vpop.f32.mrb[0].mxu0
        %v1161 = vadd.f32 %v1064, %v1160
        %v1162 = vpop.f32.mrb[0].mxu0
        %v1163 = vpop.f32.mrb[0].mxu0
        %v1164 = vadd.f32 %v1067, %v1163
        %v1165 = vpop.f32.mrb[0].mxu0
        %1166 = vmatprep.mubr.bf16.mxu0 0
        %1167 = vmatmul.mubr.bf16.gmra.mrb[0].mxu0 %v284
        %v1168 = vpop.f32.mrb[0].mxu0
        %v1169 = vadd.f32 %v1072, %v1168
        %v1170 = vpop.f32.mrb[0].mxu0
        %v1171 = vpop.f32.mrb[0].mxu0
        %v1172 = vadd.f32 %v1075, %v1171
        %v1173 = vpop.f32.mrb[0].mxu0
        %1174 = vmatprep.mubr.bf16.mxu0 0
        %1175 = vmatmul.mubr.bf16.gmra.mrb[0].mxu0 %v287
        %v1176 = vpop.f32.mrb[0].mxu0
        %v1177 = vadd.f32 %v1080, %v1176
        %v1178 = vpop.f32.mrb[0].mxu0
        %v1179 = vpop.f32.mrb[0].mxu0
        %v1180 = vadd.f32 %v1083, %v1179
        %v1181 = vpop.f32.mrb[0].mxu0
        %1182 = vmatprep.mubr.bf16.mxu0 0
        %1183 = vmatmul.mubr.bf16.gmra.mrb[0].mxu0 %v290
        %v1184 = vpop.f32.mrb[0].mxu0
        %v1185 = vadd.f32 %v1088, %v1184
        %v1186 = vpop.f32.mrb[0].mxu0
        %v1187 = vpop.f32.mrb[0].mxu0
        %v1188 = vadd.f32 %v1091, %v1187
        %v1189 = vpop.f32.mrb[0].mxu0
        %1190 = vdwg.mxu0
        %v1191 = vmul.f32 %v919, 0.125
        %v1192 = vmul.f32 %v923, 0.125
        %v1193 = vmul.f32 %v929, 0.125
        %v1194 = vmul.f32 %v933, 0.125
        %v1195 = vmul.f32 %v939, 0.125
        %v1196 = vmul.f32 %v943, 0.125
        %v1197 = vmul.f32 %v949, 0.125
        %v1198 = vmul.f32 %v953, 0.125
        %v1199 = vmul.f32 %v959, 0.125
        %v1200 = vmul.f32 %v963, 0.125
        %v1201 = vmul.f32 %v969, 0.125
        %v1202 = vmul.f32 %v973, 0.125
        %v1203 = vmul.f32 %v979, 0.125
        %v1204 = vmul.f32 %v983, 0.125
        %v1205 = vmul.f32 %v989, 0.125
        %v1206 = vmul.f32 %v993, 0.125
        %v1207 = vpack.c.bf16 %v1192, %v1191
        %v1208 = vpack.c.bf16 %v1194, %v1193
        %v1209 = vpack.c.bf16 %v1196, %v1195
        %v1210 = vpack.c.bf16 %v1198, %v1197
        %v1211 = vpack.c.bf16 %v1200, %v1199
        %v1212 = vpack.c.bf16 %v1202, %v1201
        %v1213 = vpack.c.bf16 %v1204, %v1203
        %v1214 = vpack.c.bf16 %v1206, %v1205
        %v1215 = vpack.c.bf16 %v925, %v921
        %v1216 = vpack.c.bf16 %v935, %v931
        %v1217 = vpack.c.bf16 %v945, %v941
        %v1218 = vpack.c.bf16 %v955, %v951
        %v1219 = vpack.c.bf16 %v965, %v961
        %v1220 = vpack.c.bf16 %v975, %v971
        %v1221 = vpack.c.bf16 %v985, %v981
        %v1222 = vpack.c.bf16 %v995, %v991
        %v1223 = vpack.c.bf16 %v1132, %v1129
        %v1224 = vpack.c.bf16 %v1140, %v1137
        %v1225 = vpack.c.bf16 %v1148, %v1145
        %v1226 = vpack.c.bf16 %v1156, %v1153
        %v1227 = vpack.c.bf16 %v1164, %v1161
        %v1228 = vpack.c.bf16 %v1172, %v1169
        %v1229 = vpack.c.bf16 %v1180, %v1177
        %v1230 = vpack.c.bf16 %v1188, %v1185
        %v1231 = vld [vmem:[#allocation7] sm:$0xff]
        %v1232 = vld [vmem:[#allocation7 + $0x8] sm:$0xff]
        %v1233 = vld [vmem:[#allocation7 + $0x10] sm:$0xff]
        %v1234 = vld [vmem:[#allocation7 + $0x18] sm:$0xff]
        %v1235 = vld [vmem:[#allocation7 + $0x20] sm:$0xff]
        %v1236 = vld [vmem:[#allocation7 + $0x28] sm:$0xff]
        %v1237 = vld [vmem:[#allocation7 + $0x30] sm:$0xff]
        %v1238 = vld [vmem:[#allocation7 + $0x38] sm:$0xff]
        %v1239 = vld [vmem:[#allocation7 + $0x40] sm:$0xff]
        %v1240 = vld [vmem:[#allocation7 + $0x48] sm:$0xff]
        %v1241 = vld [vmem:[#allocation7 + $0x50] sm:$0xff]
        %v1242 = vld [vmem:[#allocation7 + $0x58] sm:$0xff]
        %v1243 = vld [vmem:[#allocation7 + $0x60] sm:$0xff]
        %v1244 = vld [vmem:[#allocation7 + $0x68] sm:$0xff]
        %v1245 = vld [vmem:[#allocation7 + $0x70] sm:$0xff]
        %v1246 = vld [vmem:[#allocation7 + $0x78] sm:$0xff]
        %1247 = vmatprep.subr.bf16.mxu0 0
        %1248 = vmatpush1.bf16.xpose.msra.mxu0 %v1215
        %1249 = vmatprep.subr.bf16.mxu0 0
        %1250 = vmatpush1.bf16.xpose.msra.mxu0 %v1216
        %1251 = vmatprep.subr.bf16.mxu0 0
        %1252 = vmatpush1.bf16.xpose.msra.mxu0 %v1217
        %1253 = vmatprep.subr.bf16.mxu0 0
        %1254 = vmatpush1.bf16.xpose.msra.mxu0 %v1218
        %1255 = vmatprep.subr.bf16.mxu0 0
        %1256 = vmatpush1.bf16.xpose.msra.mxu0 %v1219
        %1257 = vmatprep.subr.bf16.mxu0 0
        %1258 = vmatpush1.bf16.xpose.msra.mxu0 %v1220
        %1259 = vmatprep.subr.bf16.mxu0 0
        %1260 = vmatpush1.bf16.xpose.msra.mxu0 %v1221
        %1261 = vmatprep.subr.bf16.mxu0 0
        %1262 = vmatpush1.bf16.xpose.msra.mxu0 %v1222
        %1263 = vmatprep.subr.bf16.mxu0 0
        %1264 = vmatpush1.bf16.xpose.msra.mxu0 0
        %1265 = vmatprep.subr.bf16.mxu0 0
        %1266 = vmatpush1.bf16.xpose.msra.mxu0 0
        %1267 = vmatprep.subr.bf16.mxu0 0
        %1268 = vmatpush1.bf16.xpose.msra.mxu0 0
        %1269 = vmatprep.subr.bf16.mxu0 0
        %1270 = vmatpush1.bf16.xpose.msra.mxu0 0
        %1271 = vmatprep.subr.bf16.mxu0 0
        %1272 = vmatpush1.bf16.xpose.msra.mxu0 0
        %1273 = vmatprep.subr.bf16.mxu0 0
        %1274 = vmatpush1.bf16.xpose.msra.mxu0 0
        %1275 = vmatprep.subr.bf16.mxu0 0
        %1276 = vmatpush1.bf16.xpose.msra.mxu0 0
        %1277 = vmatprep.subr.bf16.mxu0 0
        %1278 = vmatpush1.bf16.xpose.msra.mxu0 0
        %1279 = vmatprep.mubr.bf16.mxu0 0
        %1280 = vmatmul.mubr.bf16.gmra.mrb[0].mxu0 %v1207
        %v1281 = vpop.f32.mrb[0].mxu0
        %v1282 = vadd.f32 %v1231, %v1281
        %v1283 = vpop.f32.mrb[0].mxu0
        %v1284 = vpop.f32.mrb[0].mxu0
        %v1285 = vadd.f32 %v1232, %v1284
        %v1286 = vpop.f32.mrb[0].mxu0
        %1287 = vmatprep.mubr.bf16.mxu0 0
        %1288 = vmatmul.mubr.bf16.gmra.mrb[0].mxu0 %v1208
        %v1289 = vpop.f32.mrb[0].mxu0
        %v1290 = vadd.f32 %v1233, %v1289
        %v1291 = vpop.f32.mrb[0].mxu0
        %v1292 = vpop.f32.mrb[0].mxu0
        %v1293 = vadd.f32 %v1234, %v1292
        %v1294 = vpop.f32.mrb[0].mxu0
        %1295 = vmatprep.mubr.bf16.mxu0 0
        %1296 = vmatmul.mubr.bf16.gmra.mrb[0].mxu0 %v1209
        %v1297 = vpop.f32.mrb[0].mxu0
        %v1298 = vadd.f32 %v1235, %v1297
        %v1299 = vpop.f32.mrb[0].mxu0
        %v1300 = vpop.f32.mrb[0].mxu0
        %v1301 = vadd.f32 %v1236, %v1300
        %v1302 = vpop.f32.mrb[0].mxu0
        %1303 = vmatprep.mubr.bf16.mxu0 0
        %1304 = vmatmul.mubr.bf16.gmra.mrb[0].mxu0 %v1210
        %v1305 = vpop.f32.mrb[0].mxu0
        %v1306 = vadd.f32 %v1237, %v1305
        %v1307 = vpop.f32.mrb[0].mxu0
        %v1308 = vpop.f32.mrb[0].mxu0
        %v1309 = vadd.f32 %v1238, %v1308
        %v1310 = vpop.f32.mrb[0].mxu0
        %1311 = vmatprep.mubr.bf16.mxu0 0
        %1312 = vmatmul.mubr.bf16.gmra.mrb[0].mxu0 %v1211
        %v1313 = vpop.f32.mrb[0].mxu0
        %v1314 = vadd.f32 %v1239, %v1313
        %v1315 = vpop.f32.mrb[0].mxu0
        %v1316 = vpop.f32.mrb[0].mxu0
        %v1317 = vadd.f32 %v1240, %v1316
        %v1318 = vpop.f32.mrb[0].mxu0
        %1319 = vmatprep.mubr.bf16.mxu0 0
        %1320 = vmatmul.mubr.bf16.gmra.mrb[0].mxu0 %v1212
        %v1321 = vpop.f32.mrb[0].mxu0
        %v1322 = vadd.f32 %v1241, %v1321
        %v1323 = vpop.f32.mrb[0].mxu0
        %v1324 = vpop.f32.mrb[0].mxu0
        %v1325 = vadd.f32 %v1242, %v1324
        %v1326 = vpop.f32.mrb[0].mxu0
        %1327 = vmatprep.mubr.bf16.mxu0 0
        %1328 = vmatmul.mubr.bf16.gmra.mrb[0].mxu0 %v1213
        %v1329 = vpop.f32.mrb[0].mxu0
        %v1330 = vadd.f32 %v1243, %v1329
        %v1331 = vpop.f32.mrb[0].mxu0
        %v1332 = vpop.f32.mrb[0].mxu0
        %v1333 = vadd.f32 %v1244, %v1332
        %v1334 = vpop.f32.mrb[0].mxu0
        %1335 = vmatprep.mubr.bf16.mxu0 0
        %1336 = vmatmul.mubr.bf16.gmra.mrb[0].mxu0 %v1214
        %v1337 = vpop.f32.mrb[0].mxu0
        %v1338 = vadd.f32 %v1245, %v1337
        %v1339 = vpop.f32.mrb[0].mxu0
        %v1340 = vpop.f32.mrb[0].mxu0
        %v1341 = vadd.f32 %v1246, %v1340
        %v1342 = vpop.f32.mrb[0].mxu0
        %1343 = vdwg.mxu0
        %1344 = vmax.xlane.f32.xlu0 %v1282
        %v1345 = vpop.xlane.xlu0 %1344
        %1346 = vmax.xlane.f32.xlu0 %v1285
        %v1347 = vpop.xlane.xlu0 %1346
        %1348 = vmax.xlane.f32.xlu0 %v1290
        %v1349 = vpop.xlane.xlu0 %1348
        %1350 = vmax.xlane.f32.xlu0 %v1293
        %v1351 = vpop.xlane.xlu0 %1350
        %1352 = vmax.xlane.f32.xlu0 %v1298
        %v1353 = vpop.xlane.xlu0 %1352
        %1354 = vmax.xlane.f32.xlu0 %v1301
        %v1355 = vpop.xlane.xlu0 %1354
        %1356 = vmax.xlane.f32.xlu0 %v1306
        %v1357 = vpop.xlane.xlu0 %1356
        %1358 = vmax.xlane.f32.xlu0 %v1309
        %v1359 = vpop.xlane.xlu0 %1358
        %1360 = vmax.xlane.f32.xlu0 %v1314
        %v1361 = vpop.xlane.xlu0 %1360
        %1362 = vmax.xlane.f32.xlu0 %v1317
        %v1363 = vpop.xlane.xlu0 %1362
        %1364 = vmax.xlane.f32.xlu0 %v1322
        %v1365 = vpop.xlane.xlu0 %1364
        %1366 = vmax.xlane.f32.xlu0 %v1325
        %v1367 = vpop.xlane.xlu0 %1366
        %1368 = vmax.xlane.f32.xlu0 %v1330
        %v1369 = vpop.xlane.xlu0 %1368
        %1370 = vmax.xlane.f32.xlu0 %v1333
        %v1371 = vpop.xlane.xlu0 %1370
        %1372 = vmax.xlane.f32.xlu0 %v1338
        %v1373 = vpop.xlane.xlu0 %1372
        %1374 = vmax.xlane.f32.xlu0 %v1341
        %v1375 = vpop.xlane.xlu0 %1374
        %v1376 = vsub.f32 %v1282, %v1345
        %v1377 = vsub.f32 %v1285, %v1347
        %v1378 = vsub.f32 %v1290, %v1349
        %v1379 = vsub.f32 %v1293, %v1351
        %v1380 = vsub.f32 %v1298, %v1353
        %v1381 = vsub.f32 %v1301, %v1355
        %v1382 = vsub.f32 %v1306, %v1357
        %v1383 = vsub.f32 %v1309, %v1359
        %v1384 = vsub.f32 %v1314, %v1361
        %v1385 = vsub.f32 %v1317, %v1363
        %v1386 = vsub.f32 %v1322, %v1365
        %v1387 = vsub.f32 %v1325, %v1367
        %v1388 = vsub.f32 %v1330, %v1369
        %v1389 = vsub.f32 %v1333, %v1371
        %v1390 = vsub.f32 %v1338, %v1373
        %v1391 = vsub.f32 %v1341, %v1375
        %v1392 = vmul.f32 %v1376, 1.442695
        %v1393 = vpow.pop %v1392
        %v1394 = vmul.f32 %v1377, 1.442695
        %v1395 = vpow.pop %v1394
        %v1396 = vmul.f32 %v1378, 1.442695
        %v1397 = vpow.pop %v1396
        %v1398 = vmul.f32 %v1379, 1.442695
        %v1399 = vpow.pop %v1398
        %v1400 = vmul.f32 %v1380, 1.442695
        %v1401 = vpow.pop %v1400
        %v1402 = vmul.f32 %v1381, 1.442695
        %v1403 = vpow.pop %v1402
        %v1404 = vmul.f32 %v1382, 1.442695
        %v1405 = vpow.pop %v1404
        %v1406 = vmul.f32 %v1383, 1.442695
        %v1407 = vpow.pop %v1406
        %v1408 = vmul.f32 %v1384, 1.442695
        %v1409 = vpow.pop %v1408
        %v1410 = vmul.f32 %v1385, 1.442695
        %v1411 = vpow.pop %v1410
        %v1412 = vmul.f32 %v1386, 1.442695
        %v1413 = vpow.pop %v1412
        %v1414 = vmul.f32 %v1387, 1.442695
        %v1415 = vpow.pop %v1414
        %v1416 = vmul.f32 %v1388, 1.442695
        %v1417 = vpow.pop %v1416
        %v1418 = vmul.f32 %v1389, 1.442695
        %v1419 = vpow.pop %v1418
        %v1420 = vmul.f32 %v1390, 1.442695
        %v1421 = vpow.pop %v1420
        %v1422 = vmul.f32 %v1391, 1.442695
        %v1423 = vpow.pop %v1422
        %1424 = vadd.xlane.f32.xlu0 %v1393
        %v1425 = vpop.xlane.xlu0 %1424
        %1426 = vadd.xlane.f32.xlu0 %v1395
        %v1427 = vpop.xlane.xlu0 %1426
        %1428 = vadd.xlane.f32.xlu0 %v1397
        %v1429 = vpop.xlane.xlu0 %1428
        %1430 = vadd.xlane.f32.xlu0 %v1399
        %v1431 = vpop.xlane.xlu0 %1430
        %1432 = vadd.xlane.f32.xlu0 %v1401
        %v1433 = vpop.xlane.xlu0 %1432
        %1434 = vadd.xlane.f32.xlu0 %v1403
        %v1435 = vpop.xlane.xlu0 %1434
        %1436 = vadd.xlane.f32.xlu0 %v1405
        %v1437 = vpop.xlane.xlu0 %1436
        %1438 = vadd.xlane.f32.xlu0 %v1407
        %v1439 = vpop.xlane.xlu0 %1438
        %1440 = vadd.xlane.f32.xlu0 %v1409
        %v1441 = vpop.xlane.xlu0 %1440
        %1442 = vadd.xlane.f32.xlu0 %v1411
        %v1443 = vpop.xlane.xlu0 %1442
        %1444 = vadd.xlane.f32.xlu0 %v1413
        %v1445 = vpop.xlane.xlu0 %1444
        %1446 = vadd.xlane.f32.xlu0 %v1415
        %v1447 = vpop.xlane.xlu0 %1446
        %1448 = vadd.xlane.f32.xlu0 %v1417
        %v1449 = vpop.xlane.xlu0 %1448
        %1450 = vadd.xlane.f32.xlu0 %v1419
        %v1451 = vpop.xlane.xlu0 %1450
        %1452 = vadd.xlane.f32.xlu0 %v1421
        %v1453 = vpop.xlane.xlu0 %1452
        %1454 = vadd.xlane.f32.xlu0 %v1423
        %v1455 = vpop.xlane.xlu0 %1454
        %v1456 = vrcp.pop %v1425
        %v1457 = vrcp.pop %v1427
        %v1458 = vrcp.pop %v1429
        %v1459 = vrcp.pop %v1431
        %v1460 = vrcp.pop %v1433
        %v1461 = vrcp.pop %v1435
        %v1462 = vrcp.pop %v1437
        %v1463 = vrcp.pop %v1439
        %v1464 = vrcp.pop %v1441
        %v1465 = vrcp.pop %v1443
        %v1466 = vrcp.pop %v1445
        %v1467 = vrcp.pop %v1447
        %v1468 = vrcp.pop %v1449
        %v1469 = vrcp.pop %v1451
        %v1470 = vrcp.pop %v1453
        %v1471 = vrcp.pop %v1455
        %v1472 = vmul.f32 %v1393, %v1456
        %v1473 = vmul.f32 %v1395, %v1457
        %v1474 = vmul.f32 %v1397, %v1458
        %v1475 = vmul.f32 %v1399, %v1459
        %v1476 = vmul.f32 %v1401, %v1460
        %v1477 = vmul.f32 %v1403, %v1461
        %v1478 = vmul.f32 %v1405, %v1462
        %v1479 = vmul.f32 %v1407, %v1463
        %v1480 = vmul.f32 %v1409, %v1464
        %v1481 = vmul.f32 %v1411, %v1465
        %v1482 = vmul.f32 %v1413, %v1466
        %v1483 = vmul.f32 %v1415, %v1467
        %v1484 = vmul.f32 %v1417, %v1468
        %v1485 = vmul.f32 %v1419, %v1469
        %v1486 = vmul.f32 %v1421, %v1470
        %v1487 = vmul.f32 %v1423, %v1471
        %v1488 = vpack.c.bf16 %v1473, %v1472
        %v1489 = vpack.c.bf16 %v1475, %v1474
        %v1490 = vpack.c.bf16 %v1477, %v1476
        %v1491 = vpack.c.bf16 %v1479, %v1478
        %v1492 = vpack.c.bf16 %v1481, %v1480
        %v1493 = vpack.c.bf16 %v1483, %v1482
        %v1494 = vpack.c.bf16 %v1485, %v1484
        %v1495 = vpack.c.bf16 %v1487, %v1486
        %1496 = vmatprep.subr.bf16.mxu0 0
        %1497 = vmatpush1.bf16.msra.mxu0 %v1223
        %1498 = vmatprep.subr.bf16.mxu0 0
        %1499 = vmatpush1.bf16.msra.mxu0 %v1224
        %1500 = vmatprep.subr.bf16.mxu0 0
        %1501 = vmatpush1.bf16.msra.mxu0 %v1225
        %1502 = vmatprep.subr.bf16.mxu0 0
        %1503 = vmatpush1.bf16.msra.mxu0 %v1226
        %1504 = vmatprep.subr.bf16.mxu0 0
        %1505 = vmatpush1.bf16.msra.mxu0 %v1227
        %1506 = vmatprep.subr.bf16.mxu0 0
        %1507 = vmatpush1.bf16.msra.mxu0 %v1228
        %1508 = vmatprep.subr.bf16.mxu0 0
        %1509 = vmatpush1.bf16.msra.mxu0 %v1229
        %1510 = vmatprep.subr.bf16.mxu0 0
        %1511 = vmatpush1.bf16.msra.mxu0 %v1230
        %1512 = vmatprep.subr.bf16.mxu0 0
        %1513 = vmatpush1.bf16.msra.mxu0 0
        %1514 = vmatprep.subr.bf16.mxu0 0
        %1515 = vmatpush1.bf16.msra.mxu0 0
        %1516 = vmatprep.subr.bf16.mxu0 0
        %1517 = vmatpush1.bf16.msra.mxu0 0
        %1518 = vmatprep.subr.bf16.mxu0 0
        %1519 = vmatpush1.bf16.msra.mxu0 0
        %1520 = vmatprep.subr.bf16.mxu0 0
        %1521 = vmatpush1.bf16.msra.mxu0 0
        %1522 = vmatprep.subr.bf16.mxu0 0
        %1523 = vmatpush1.bf16.msra.mxu0 0
        %1524 = vmatprep.subr.bf16.mxu0 0
        %1525 = vmatpush1.bf16.msra.mxu0 0
        %1526 = vmatprep.subr.bf16.mxu0 0
        %1527 = vmatpush1.bf16.msra.mxu0 0
        %1528 = vmatprep.mubr.bf16.mxu0 0
        %1529 = vmatmul.mubr.bf16.gmra.mrb[0].mxu0 %v1488
        %v1530 = vpop.f32.mrb[0].mxu0
        %v1531 = vadd.f32 0.0, %v1530
        %v1532 = vpop.f32.mrb[0].mxu0
        %v1533 = vpop.f32.mrb[0].mxu0
        %v1534 = vadd.f32 0.0, %v1533
        %v1535 = vpop.f32.mrb[0].mxu0
        %1536 = vmatprep.mubr.bf16.mxu0 0
        %1537 = vmatmul.mubr.bf16.gmra.mrb[0].mxu0 %v1489
        %v1538 = vpop.f32.mrb[0].mxu0
        %v1539 = vadd.f32 0.0, %v1538
        %v1540 = vpop.f32.mrb[0].mxu0
        %v1541 = vpop.f32.mrb[0].mxu0
        %v1542 = vadd.f32 0.0, %v1541
        %v1543 = vpop.f32.mrb[0].mxu0
        %1544 = vmatprep.mubr.bf16.mxu0 0
        %1545 = vmatmul.mubr.bf16.gmra.mrb[0].mxu0 %v1490
        %v1546 = vpop.f32.mrb[0].mxu0
        %v1547 = vadd.f32 0.0, %v1546
        %v1548 = vpop.f32.mrb[0].mxu0
        %v1549 = vpop.f32.mrb[0].mxu0
        %v1550 = vadd.f32 0.0, %v1549
        %v1551 = vpop.f32.mrb[0].mxu0
        %1552 = vmatprep.mubr.bf16.mxu0 0
        %1553 = vmatmul.mubr.bf16.gmra.mrb[0].mxu0 %v1491
        %v1554 = vpop.f32.mrb[0].mxu0
        %v1555 = vadd.f32 0.0, %v1554
        %v1556 = vpop.f32.mrb[0].mxu0
        %v1557 = vpop.f32.mrb[0].mxu0
        %v1558 = vadd.f32 0.0, %v1557
        %v1559 = vpop.f32.mrb[0].mxu0
        %1560 = vmatprep.mubr.bf16.mxu0 0
        %1561 = vmatmul.mubr.bf16.gmra.mrb[0].mxu0 %v1492
        %v1562 = vpop.f32.mrb[0].mxu0
        %v1563 = vadd.f32 0.0, %v1562
        %v1564 = vpop.f32.mrb[0].mxu0
        %v1565 = vpop.f32.mrb[0].mxu0
        %v1566 = vadd.f32 0.0, %v1565
        %v1567 = vpop.f32.mrb[0].mxu0
        %1568 = vmatprep.mubr.bf16.mxu0 0
        %1569 = vmatmul.mubr.bf16.gmra.mrb[0].mxu0 %v1493
        %v1570 = vpop.f32.mrb[0].mxu0
        %v1571 = vadd.f32 0.0, %v1570
        %v1572 = vpop.f32.mrb[0].mxu0
        %v1573 = vpop.f32.mrb[0].mxu0
        %v1574 = vadd.f32 0.0, %v1573
        %v1575 = vpop.f32.mrb[0].mxu0
        %1576 = vmatprep.mubr.bf16.mxu0 0
        %1577 = vmatmul.mubr.bf16.gmra.mrb[0].mxu0 %v1494
        %v1578 = vpop.f32.mrb[0].mxu0
        %v1579 = vadd.f32 0.0, %v1578
        %v1580 = vpop.f32.mrb[0].mxu0
        %v1581 = vpop.f32.mrb[0].mxu0
        %v1582 = vadd.f32 0.0, %v1581
        %v1583 = vpop.f32.mrb[0].mxu0
        %1584 = vmatprep.mubr.bf16.mxu0 0
        %1585 = vmatmul.mubr.bf16.gmra.mrb[0].mxu0 %v1495
        %v1586 = vpop.f32.mrb[0].mxu0
        %v1587 = vadd.f32 0.0, %v1586
        %v1588 = vpop.f32.mrb[0].mxu0
        %v1589 = vpop.f32.mrb[0].mxu0
        %v1590 = vadd.f32 0.0, %v1589
        %v1591 = vpop.f32.mrb[0].mxu0
        %1592 = vdwg.mxu0
        %1593 = vst [vmem:[%s217] sm:$0xff] %v1531
        %1594 = vst [vmem:[%s217 + $0x8] sm:$0xff] %v1534
        %1595 = vst [vmem:[%s217 + $0x10] sm:$0xff] %v1539
        %1596 = vst [vmem:[%s217 + $0x18] sm:$0xff] %v1542
        %1597 = vst [vmem:[%s217 + $0x20] sm:$0xff] %v1547
        %1598 = vst [vmem:[%s217 + $0x28] sm:$0xff] %v1550
        %1599 = vst [vmem:[%s217 + $0x30] sm:$0xff] %v1555
        %1600 = vst [vmem:[%s217 + $0x38] sm:$0xff] %v1558
        %1601 = vst [vmem:[%s217 + $0x40] sm:$0xff] %v1563
        %1602 = vst [vmem:[%s217 + $0x48] sm:$0xff] %v1566
        %1603 = vst [vmem:[%s217 + $0x50] sm:$0xff] %v1571
        %1604 = vst [vmem:[%s217 + $0x58] sm:$0xff] %v1574
        %1605 = vst [vmem:[%s217 + $0x60] sm:$0xff] %v1579
        %1606 = vst [vmem:[%s217 + $0x68] sm:$0xff] %v1582
        %1607 = vst [vmem:[%s217 + $0x70] sm:$0xff] %v1587
        %1608 = vst [vmem:[%s217 + $0x78] sm:$0xff] %v1590
        %s1609 = sand.u32 %s97, 1
        %s1610 = scalar_lea.sflag [#allocation4], %s1609
        %s1611 = sand.u32 %s97, 1
        %s1612 = smul.addr %s1611, 128
        %s1613 = scalar_lea.vmem [#allocation8], %s1612
        // Predicated region
        $region45: #{tpu_custom_call.1} parent=31 // pred_check
          %p1614 = pneg %p107
        $region46: #{tpu_custom_call.1} parent=31 // pred_check_branch
          %1616 = sbr.rel (%p1614) target = $region48
        $region47: #{tpu_custom_call.1} parent=31 // pred_region
          %s1618 = ssub.s32 2048, 2048
          %1619 = vsyncadd %s1610, %s1618
          %s1620 = smul.addr %s21, 16
          %s1621 = smul.addr %s1620, 128
          %s1622 = scalar_lea.hbm %s3, %s1621
          %s1623 = sshll.u32 %s1613, 4
          %s1624 = int_to_ptr.vmem [resolvable:$true] %s1623
          %1629 = dma.vmem_to_hbm [thread:$0]  %s1624, 2048, %s1622, %s1610, 128, 128, 8
        $region48: #{tpu_custom_call.1} parent=31 // pred_fallthru
          _
      $region32: #{tpu_custom_call.1} parent=5 // pred_fallthru
        _
      %p1630 = scmp.le.s32.totalorder 2, %s16
      // Predicated region
      $region49: #{tpu_custom_call.1} parent=5 // pred_check
        %p1631 = pneg %p1630
      $region50: #{tpu_custom_call.1} parent=5 // pred_check_branch
        %1633 = sbr.rel (%p1631) target = $region52
      $region51: #{tpu_custom_call.1} parent=5 // pred_region
        %s1634 = ssub.s32 %s16, 2
        // Predicated region
        $region53: #{tpu_custom_call.1} parent=51 // pred_check
          %p1635 = pneg %p113
        $region54: #{tpu_custom_call.1} parent=51 // pred_check_branch
          %1637 = sbr.rel (%p1635) target = $region56
        $region55: #{tpu_custom_call.1} parent=51 // pred_region
          %s1638 = sand.u32 %s98, 1
          %s1639 = scalar_lea.sflag [#allocation4], %s1638
          %s1640 = sand.u32 %s98, 1
          %s1641 = smul.addr %s1640, 128
          %s1642 = scalar_lea.vmem [#allocation8], %s1641
          %1643 = dma.done %s1639, 2048
        $region56: #{tpu_custom_call.1} parent=51 // pred_fallthru
          _
      $region52: #{tpu_custom_call.1} parent=5 // pred_fallthru
        _
    $region6: #{tpu_custom_call.1} parent=1 // loop_footer
      %s20 = sadd.s32 1, %s16
    $region7: #{tpu_custom_call.1} parent=1 // loop_footer_branch
      %15 = sbr.rel target = $region3
    $region8: #{tpu_custom_call.1} parent=1 // loop_exit
      _
    %1644 = vsyncpa [#allocation3], 1
    %s1645 = scalar_lea.sflag [#allocation3], 1
    %1646 = vsyncpa %s1645, 1
    %1647 = vsyncpa [#allocation6], 1
    %1648 = vsyncpa [#allocation4], 1
    %s1649 = scalar_lea.sflag [#allocation4], 1
    %1650 = vsyncpa %s1649, 1

</llo_original>
